<compile_context>
chip_gen: v5e
topology: v5e:2x2
jax: 0.10.0
libtpu: 0.0.40
codegen_flags: <defaults>
</compile_context>

<pallas_src>
import jax
import jax.numpy as jnp
from jax.experimental import pallas as pl
from jax.experimental.pallas import tpu as pltpu

BN_EPS = 1e-5
LANES = 128  # TPU lane width; channels are padded up to this


# --------------------------------------------------------------------------
# small helpers (specs / packing)
# --------------------------------------------------------------------------
def _full_spec(a):
    nd = a.ndim
    return pl.BlockSpec(a.shape, lambda n: (0,) * nd)


def _batch_spec(tail):
    nd = len(tail)
    return pl.BlockSpec((1,) + tuple(tail), lambda n: (n,) + (0,) * nd)


def _pad_lane(a):
    """Zero-pad the last (channel) axis up to LANES."""
    c = a.shape[-1]
    if c == LANES:
        return a
    return jnp.pad(a, [(0, 0)] * (a.ndim - 1) + [(0, LANES - c)])


def _pack_w3x3(w):
    """HWIO [3,3,Cin,Cout] -> lane-padded im2col weight [9*LANES, LANES] bf16."""
    kh, kw, cin, cout = w.shape
    wp = jnp.pad(w, ((0, 0), (0, 0), (0, LANES - cin), (0, LANES - cout)))
    return wp.reshape(kh * kw * LANES, LANES).astype(jnp.bfloat16)


def _pack_w1x1(w):
    cin, cout = w.shape
    return jnp.pad(w, ((0, LANES - cin), (0, LANES - cout))).astype(jnp.bfloat16)


def _pack_bn(scale, shift):
    return (_pad_lane(scale).reshape(1, 1, LANES),
            _pad_lane(shift).reshape(1, 1, LANES))


# --------------------------------------------------------------------------
# in-kernel building blocks
# --------------------------------------------------------------------------
def _im2col_dot(pad_ref, w_ref, Ho, Wo):
    """Single im2col matmul from a zero-padded (stride-1) activation scratch
    of shape [Ho+2, Wo+2, LANES]:  [Ho*Wo, 9*LANES] x [9*LANES, LANES]."""
    cols = [pad_ref[dy:dy + Ho, dx:dx + Wo, :]
            .reshape(Ho * Wo, LANES).astype(jnp.bfloat16)
            for dy in range(3) for dx in range(3)]
    return jnp.dot(jnp.concatenate(cols, axis=1), w_ref[...],
                   preferred_element_type=jnp.float32)


def _make_conv0_kernel(H, W):
    """pre_process: 3x3 conv stride 1 + bias (no BN / ReLU)."""
    def kernel(x_ref, w_ref, b_ref, o_ref, pad):
        pad[...] = jnp.zeros_like(pad)
        pad[1:H + 1, 1:W + 1, :] = x_ref[0]
        out = _im2col_dot(pad, w_ref, H, W) + b_ref[0]
        o_ref[0] = out.reshape(H, W, LANES).astype(o_ref.dtype)
    return kernel


def _make_unit_kernel(stride, has_shortcut, H, W):
    """Whole pre-activation unit fused in one kernel (expansion == 1)."""
    Ho, Wo = H // stride, W // stride
    n_ph = 1 if stride == 1 else 4

    def kernel(*refs):
        i = 0
        ph = refs[i:i + n_ph]; i += n_ph
        w1_ref, w2_ref = refs[i], refs[i + 1]; i += 2
        s1_ref, b1_ref, s2_ref, b2_ref = refs[i:i + 4]; i += 4
        if has_shortcut:
            wi_ref, si_ref, bi_ref = refs[i:i + 3]; i += 3
        o_ref = refs[i]; i += 1
        pads = refs[i:i + n_ph]; i += n_ph
        pad2 = refs[i]

        # zero the padded scratches (cheap; keeps borders correct on every
        # grid step / core).
        for p in pads:
            p[...] = jnp.zeros_like(p)
        pad2[...] = jnp.zeros_like(pad2)

        s1, b1 = s1_ref[...], b1_ref[...]
        bn1 = lambda v: jnp.maximum(v * s1 + b1, 0.0)

        if stride == 1:
            x = ph[0][0]                                    # [H, W, LANES]
            pads[0][1:H + 1, 1:W + 1, :] = bn1(x)
            sc_src = x
        else:
            # phase-split input: x[0::2,0::2], x[0::2,1::2], x[1::2,0::2],
            # x[1::2,1::2].  Buffers hold xpad-parity grids with a 1-zero pad
            # on the "even" side, so every stride-2 tap is a plain slice.
            p00, p01, p10, p11 = (r[0] for r in ph)
            pads[0][0:Ho, 0:Wo, :] = bn1(p00)               # (odd , odd ) xpad rows/cols
            pads[1][0:Ho, 1:Wo + 1, :] = bn1(p01)           # (odd , even)
            pads[2][1:Ho + 1, 0:Wo, :] = bn1(p10)           # (even, odd )
            pads[3][1:Ho + 1, 1:Wo + 1, :] = bn1(p11)       # (even, even)
            sc_src = p00                                    # x at even rows/cols

        # ---- conv1: one im2col matmul over all 9 taps --------------------
        cols = []
        for dy in range(3):
            for dx in range(3):
                if stride == 1:
                    tap = pads[0][dy:dy + Ho, dx:dx + Wo, :]
                else:
                    bsel = (0 if dy % 2 == 1 else 2) + (0 if dx % 2 == 1 else 1)
                    tap = pads[bsel][dy // 2:dy // 2 + Ho,
                                     dx // 2:dx // 2 + Wo, :]
                cols.append(tap.reshape(Ho * Wo, LANES).astype(jnp.bfloat16))
        h = jnp.dot(jnp.concatenate(cols, axis=1), w1_ref[...],
                    preferred_element_type=jnp.float32)      # [Ho*Wo, LANES]

        # ---- dropout(p=0) is identity; BN2 + ReLU + conv2 (stride 1) -----
        a2 = jnp.maximum(h.reshape(Ho, Wo, LANES) * s2_ref[...] + b2_ref[...],
                         0.0)
        pad2[1:Ho + 1, 1:Wo + 1, :] = a2
        f = _im2col_dot(pad2, w2_ref, Ho, Wo)                # [Ho*Wo, LANES]

        # ---- shortcut / residual (all kept in VMEM) -----------------------
        if has_shortcut:
            xs = sc_src * si_ref[...] + bi_ref[...]          # i_block BN (no ReLU)
            res = jnp.dot(xs.reshape(Ho * Wo, LANES).astype(jnp.bfloat16),
                          wi_ref[...], preferred_element_type=jnp.float32)
        else:
            res = sc_src.reshape(Ho * Wo, LANES)             # identity

        o_ref[0] = (f + res).reshape(Ho, Wo, LANES).astype(o_ref.dtype)

    return kernel


def _trans_kernel(x_ref, s_ref, b_ref, o_ref):
    o_ref[...] = jnp.maximum(x_ref[...] * s_ref[...] + b_ref[...], 0.0)


# --------------------------------------------------------------------------
# pallas_call wrappers
# --------------------------------------------------------------------------
def _conv0(x, w_hwio, bias):
    N, H, W, _ = x.shape
    w = _pack_w3x3(w_hwio)
    b = _pad_lane(bias).reshape(1, 1, LANES)
    return pl.pallas_call(
        _make_conv0_kernel(H, W),
        out_shape=jax.ShapeDtypeStruct((N, H, W, LANES), jnp.float32),
        grid_spec=pltpu.PrefetchScalarGridSpec(
            num_scalar_prefetch=0, grid=(N,),
            in_specs=[_batch_spec((H, W, LANES)), _full_spec(w), _full_spec(b)],
            out_specs=_batch_spec((H, W, LANES)),
            scratch_shapes=[pltpu.VMEM((H + 2, W + 2, LANES), jnp.float32)]),
        compiler_params=pltpu.CompilerParams(
            dimension_semantics=("parallel",)),
    )(x, w, b)


def _unit(x, u):
    """x: [N, H, W, LANES] lane-padded f32 activations."""
    N, H, W, _ = x.shape
    stride = u['stride']
    has_shortcut = 'i_conv_w' in u
    assert stride == 1 or has_shortcut
    Ho, Wo = H // stride, W // stride

    if stride == 1:
        phases = [x]
        ph_hw = (H, W)
    else:
        phases = [x[:, 0::2, 0::2, :], x[:, 0::2, 1::2, :],
                  x[:, 1::2, 0::2, :], x[:, 1::2, 1::2, :]]
        ph_hw = (Ho, Wo)

    s1, b1 = _pack_bn(*u['bn1'])
    s2, b2 = _pack_bn(*u['bn2'])
    inputs = [*phases, _pack_w3x3(u['conv1_w']), _pack_w3x3(u['conv2_w']),
              s1, b1, s2, b2]
    if has_shortcut:
        si, bi = _pack_bn(*u['i_bn'])
        inputs += [_pack_w1x1(u['i_conv_w']), si, bi]

    in_specs = ([_batch_spec((ph_hw[0], ph_hw[1], LANES))] * len(phases)
                + [_full_spec(a) for a in inputs[len(phases):]])

    if stride == 1:
        pad_scratch = [pltpu.VMEM((H + 2, W + 2, LANES), jnp.float32)]
    else:
        pad_scratch = [pltpu.VMEM((Ho + 1, Wo + 1, LANES), jnp.float32)
                       for _ in range(4)]
    scratch = pad_scratch + [pltpu.VMEM((Ho + 2, Wo + 2, LANES), jnp.float32)]

    return pl.pallas_call(
        _make_unit_kernel(stride, has_shortcut, H, W),
        out_shape=jax.ShapeDtypeStruct((N, Ho, Wo, LANES), jnp.float32),
        grid_spec=pltpu.PrefetchScalarGridSpec(
            num_scalar_prefetch=0, grid=(N,),
            in_specs=in_specs,
            out_specs=_batch_spec((Ho, Wo, LANES)),
            scratch_shapes=scratch),
        compiler_params=pltpu.CompilerParams(
            dimension_semantics=("parallel",)),
    )(*inputs)


def _transition(x, scale, shift):
    N, H, W, _ = x.shape
    s = _pad_lane(scale).reshape(1, 1, LANES)
    b = _pad_lane(shift).reshape(1, 1, LANES)
    return pl.pallas_call(
        _trans_kernel,
        out_shape=jax.ShapeDtypeStruct((N, H, W, LANES), jnp.float32),
        grid_spec=pltpu.PrefetchScalarGridSpec(
            num_scalar_prefetch=0, grid=(N,),
            in_specs=[_batch_spec((H, W, LANES)), _full_spec(s), _full_spec(b)],
            out_specs=_batch_spec((H, W, LANES))),
        compiler_params=pltpu.CompilerParams(
            dimension_semantics=("parallel",)),
    )(x, s, b)


# --------------------------------------------------------------------------
# deterministic parameter init (eval-mode BN folded into scale/shift)
# --------------------------------------------------------------------------
def _bn_params(key, C):
    k1, k2, k3, k4 = jax.random.split(key, 4)
    gamma = jax.random.uniform(k1, (C,), jnp.float32, 0.8, 1.2)
    beta = jax.random.uniform(k2, (C,), jnp.float32, -0.1, 0.1)
    mean = jax.random.uniform(k3, (C,), jnp.float32, -0.1, 0.1)
    var = jax.random.uniform(k4, (C,), jnp.float32, 0.5, 1.5)
    scale = gamma / jnp.sqrt(var + BN_EPS)
    shift = beta - mean * scale
    return scale, shift


def _conv_w(key, kh, kw, cin, cout):
    fan_in = kh * kw * cin
    return jax.random.normal(key, (kh, kw, cin, cout), jnp.float32) / jnp.sqrt(fan_in)


def init_params(key, expansion, block_config, num_input_channels,
                num_init_features):
    assert expansion == 1
    # TODO(synk): bottleneck path (expansion > 1) and small_input=False
    # (7x7 conv + maxpool pre-process) are not implemented for this config.
    keys = iter(jax.random.split(key, 128))
    params = {}
    F = num_init_features
    params['conv0_w'] = _conv_w(next(keys), 3, 3, num_input_channels, F)
    params['conv0_b'] = jax.random.uniform(next(keys), (F,), jnp.float32, -0.05, 0.05)

    in_c, out_c = F, F
    blocks = []
    for idx, depth in enumerate(block_config):
        units = []
        down = (idx != 0)
        ic = in_c
        for i in range(depth):
            stride = 2 if (i == 0 and down) else 1
            u = {'stride': stride}
            u['bn1'] = _bn_params(next(keys), ic)
            u['conv1_w'] = _conv_w(next(keys), 3, 3, ic, out_c)
            u['bn2'] = _bn_params(next(keys), out_c)
            u['conv2_w'] = _conv_w(next(keys), 3, 3, out_c, out_c)
            if stride != 1 or ic != expansion * out_c:
                u['i_bn'] = _bn_params(next(keys), ic)
                u['i_conv_w'] = _conv_w(next(keys), 1, 1, ic,
                                        expansion * out_c)[0, 0]  # [Cin, Cout]
            units.append(u)
            ic = out_c * expansion
        blocks.append(units)
        in_c = out_c * expansion
        out_c = out_c * 2
    params['blocks'] = blocks
    params['trans_bn'] = _bn_params(next(keys), in_c)
    params['num_feature_channel'] = in_c
    return params


# --------------------------------------------------------------------------
# forward pass (all conv / BN / ReLU / residual math runs in Pallas)
# --------------------------------------------------------------------------
def forward(params, x_nchw):
    x = jnp.transpose(x_nchw, (0, 2, 3, 1)).astype(jnp.float32)  # NCHW -> NHWC
    x = _pad_lane(x)                                             # lane-dense channels
    x = _conv0(x, params['conv0_w'], params['conv0_b'])
    for units in params['blocks']:
        for u in units:
            x = _unit(x, u)
    x = _transition(x, *params['trans_bn'])
    x = x[..., :params['num_feature_channel']]                   # drop lane padding
    return jnp.transpose(x, (0, 3, 1, 2))                        # back to NCHW


# --------------------------------------------------------------------------
# pure-JAX reference (same bf16-operand / f32-accumulate precision policy)
# --------------------------------------------------------------------------
def _ref_conv(x, w, stride, padding, bias=None):
    out = jax.lax.conv_general_dilated(
        x.astype(jnp.bfloat16), w.astype(jnp.bfloat16),
        (stride, stride), [(padding, padding)] * 2,
        dimension_numbers=('NHWC', 'HWIO', 'NHWC'),
        preferred_element_type=jnp.float32)
    if bias is not None:
        out = out + bias.reshape(1, 1, 1, -1)
    return out


def ref_forward(params, x_nchw):
    x = jnp.transpose(x_nchw, (0, 2, 3, 1)).astype(jnp.float32)
    x = _ref_conv(x, params['conv0_w'], 1, 1, params['conv0_b'])
    for units in params['blocks']:
        for u in units:
            s = u['stride']
            s1, b1 = u['bn1']
            s2, b2 = u['bn2']
            a = jnp.maximum(x * s1 + b1, 0.0)
            h = _ref_conv(a, u['conv1_w'], s, 1)
            a2 = jnp.maximum(h * s2 + b2, 0.0)
            f = _ref_conv(a2, u['conv2_w'], 1, 1)
            if 'i_conv_w' in u:
                si, bi = u['i_bn']
                wi = u['i_conv_w'].reshape(1, 1, *u['i_conv_w'].shape)
                res = _ref_conv(x * si + bi, wi, s, 0)
            else:
                res = x
            x = f + res
    ts, tb = params['trans_bn']
    x = jnp.maximum(x * ts + tb, 0.0)
    return jnp.transpose(x, (0, 3, 1, 2))


# --------------------------------------------------------------------------
if __name__ == "__main__":
    key = jax.random.PRNGKey(0)
    pkey, xkey = jax.random.split(key)

    expansion = 1
    block_config = (1, 1)
    num_input_channels = 4
    num_init_features = 8

    params = init_params(pkey, expansion, block_config, num_input_channels,
                         num_init_features)

    # PyTorch-style NCHW input
    x = jax.random.normal(xkey, (2, num_input_channels, 16, 16), jnp.float32)

    out = jax.block_until_ready(forward(params, x))

    # channels = num_init_features * 2**(len(block_config)-1) * expansion
    assert out.shape == (2, params['num_feature_channel'], 8, 8), out.shape

    ref = jax.block_until_ready(ref_forward(params, x))
    err = float(jnp.max(jnp.abs(out - ref)))
    assert jnp.allclose(out, ref, rtol=2e-3, atol=2e-3), err

    print("KERNEL_OK")
</pallas_src>

<mosaic_0001>
module attributes {stable_mosaic.version = 11 : i64} {
  func.func @kernel(%arg0: i32, %arg1: memref<1x16x16x128xf32, #tpu.memory_space<vmem>>, %arg2: memref<1152x128xbf16, #tpu.memory_space<vmem>>, %arg3: memref<1x1x128xf32, #tpu.memory_space<vmem>>, %arg4: memref<1x16x16x128xf32, #tpu.memory_space<vmem>>, %arg5: memref<18x18x128xf32, #tpu.memory_space<vmem>>) attributes {dimension_semantics = [#tpu.dimension_semantics<parallel>], iteration_bounds = array<i64: 2>, scalar_prefetch = 0 : i64, scratch_operands = 1 : i64, tpu.core_type = #tpu.core_type<tc>, window_params = [{transform_indices = @transform_0, window_bounds = array<i64: 1, 16, 16, 128>}, {pipeline_mode = #tpu.pipeline_mode<synchronous>, transform_indices = @transform_1, window_bounds = array<i64: 1152, 128>}, {pipeline_mode = #tpu.pipeline_mode<synchronous>, transform_indices = @transform_2, window_bounds = array<i64: 1, 1, 128>}, {transform_indices = @transform_3, window_bounds = array<i64: 1, 16, 16, 128>}]} {
    %cst = arith.constant 0.000000e+00 : f32
    %0 = vector.broadcast %cst : f32 to vector<18x18x128xf32>
    %c0 = arith.constant 0 : index
    %c0_0 = arith.constant 0 : index
    %c0_1 = arith.constant 0 : index
    %1 = vector.load %arg5[%c0, %c0_0, %c0_1] : memref<18x18x128xf32, #tpu.memory_space<vmem>>, vector<18x18x128xf32>
    tpu.vector_store %arg5[%c0, %c0_0, %c0_1], %0 {strides = array<i32>} : memref<18x18x128xf32, #tpu.memory_space<vmem>>, vector<18x18x128xf32>,
    %c0_2 = arith.constant 0 : index
    %c0_3 = arith.constant 0 : index
    %c0_4 = arith.constant 0 : index
    %c0_5 = arith.constant 0 : index
    %2 = vector.load %arg1[%c0_2, %c0_3, %c0_4, %c0_5] : memref<1x16x16x128xf32, #tpu.memory_space<vmem>>, vector<1x16x16x128xf32>
    %3 = vector.shape_cast %2 : vector<1x16x16x128xf32> to vector<16x16x128xf32>
    %c1 = arith.constant 1 : index
    %c1_6 = arith.constant 1 : index
    %c0_7 = arith.constant 0 : index
    %4 = vector.load %arg5[%c1, %c1_6, %c0_7] : memref<18x18x128xf32, #tpu.memory_space<vmem>>, vector<16x16x128xf32>
    tpu.vector_store %arg5[%c1, %c1_6, %c0_7], %3 {strides = array<i32>} : memref<18x18x128xf32, #tpu.memory_space<vmem>>, vector<16x16x128xf32>,
    %c0_8 = arith.constant 0 : index
    %c0_9 = arith.constant 0 : index
    %c0_10 = arith.constant 0 : index
    %5 = vector.load %arg5[%c0_8, %c0_9, %c0_10] : memref<18x18x128xf32, #tpu.memory_space<vmem>>, vector<16x16x128xf32>
    %6 = vector.shape_cast %5 : vector<16x16x128xf32> to vector<256x128xf32>
    %7 = arith.truncf %6 : vector<256x128xf32> to vector<256x128xbf16>
    %c0_11 = arith.constant 0 : index
    %c1_12 = arith.constant 1 : index
    %c0_13 = arith.constant 0 : index
    %8 = vector.load %arg5[%c0_11, %c1_12, %c0_13] : memref<18x18x128xf32, #tpu.memory_space<vmem>>, vector<16x16x128xf32>
    %9 = vector.shape_cast %8 : vector<16x16x128xf32> to vector<256x128xf32>
    %10 = arith.truncf %9 : vector<256x128xf32> to vector<256x128xbf16>
    %c0_14 = arith.constant 0 : index
    %c2 = arith.constant 2 : index
    %c0_15 = arith.constant 0 : index
    %11 = vector.load %arg5[%c0_14, %c2, %c0_15] : memref<18x18x128xf32, #tpu.memory_space<vmem>>, vector<16x16x128xf32>
    %12 = vector.shape_cast %11 : vector<16x16x128xf32> to vector<256x128xf32>
    %13 = arith.truncf %12 : vector<256x128xf32> to vector<256x128xbf16>
    %c1_16 = arith.constant 1 : index
    %c0_17 = arith.constant 0 : index
    %c0_18 = arith.constant 0 : index
    %14 = vector.load %arg5[%c1_16, %c0_17, %c0_18] : memref<18x18x128xf32, #tpu.memory_space<vmem>>, vector<16x16x128xf32>
    %15 = vector.shape_cast %14 : vector<16x16x128xf32> to vector<256x128xf32>
    %16 = arith.truncf %15 : vector<256x128xf32> to vector<256x128xbf16>
    %c1_19 = arith.constant 1 : index
    %c1_20 = arith.constant 1 : index
    %c0_21 = arith.constant 0 : index
    %17 = vector.load %arg5[%c1_19, %c1_20, %c0_21] : memref<18x18x128xf32, #tpu.memory_space<vmem>>, vector<16x16x128xf32>
    %18 = vector.shape_cast %17 : vector<16x16x128xf32> to vector<256x128xf32>
    %19 = arith.truncf %18 : vector<256x128xf32> to vector<256x128xbf16>
    %c1_22 = arith.constant 1 : index
    %c2_23 = arith.constant 2 : index
    %c0_24 = arith.constant 0 : index
    %20 = vector.load %arg5[%c1_22, %c2_23, %c0_24] : memref<18x18x128xf32, #tpu.memory_space<vmem>>, vector<16x16x128xf32>
    %21 = vector.shape_cast %20 : vector<16x16x128xf32> to vector<256x128xf32>
    %22 = arith.truncf %21 : vector<256x128xf32> to vector<256x128xbf16>
    %c2_25 = arith.constant 2 : index
    %c0_26 = arith.constant 0 : index
    %c0_27 = arith.constant 0 : index
    %23 = vector.load %arg5[%c2_25, %c0_26, %c0_27] : memref<18x18x128xf32, #tpu.memory_space<vmem>>, vector<16x16x128xf32>
    %24 = vector.shape_cast %23 : vector<16x16x128xf32> to vector<256x128xf32>
    %25 = arith.truncf %24 : vector<256x128xf32> to vector<256x128xbf16>
    %c2_28 = arith.constant 2 : index
    %c1_29 = arith.constant 1 : index
    %c0_30 = arith.constant 0 : index
    %26 = vector.load %arg5[%c2_28, %c1_29, %c0_30] : memref<18x18x128xf32, #tpu.memory_space<vmem>>, vector<16x16x128xf32>
    %27 = vector.shape_cast %26 : vector<16x16x128xf32> to vector<256x128xf32>
    %28 = arith.truncf %27 : vector<256x128xf32> to vector<256x128xbf16>
    %c2_31 = arith.constant 2 : index
    %c2_32 = arith.constant 2 : index
    %c0_33 = arith.constant 0 : index
    %29 = vector.load %arg5[%c2_31, %c2_32, %c0_33] : memref<18x18x128xf32, #tpu.memory_space<vmem>>, vector<16x16x128xf32>
    %30 = vector.shape_cast %29 : vector<16x16x128xf32> to vector<256x128xf32>
    %31 = arith.truncf %30 : vector<256x128xf32> to vector<256x128xbf16>
    %32 = tpu.concatenate %7, %10, %13, %16, %19, %22, %25, %28, %31 in 1 : vector<256x128xbf16>, vector<256x128xbf16>, vector<256x128xbf16>, vector<256x128xbf16>, vector<256x128xbf16>, vector<256x128xbf16>, vector<256x128xbf16>, vector<256x128xbf16>, vector<256x128xbf16> -> vector<256x1152xbf16>
    %c0_34 = arith.constant 0 : index
    %c0_35 = arith.constant 0 : index
    %33 = vector.load %arg2[%c0_34, %c0_35] : memref<1152x128xbf16, #tpu.memory_space<vmem>>, vector<1152x128xbf16>
    %cst_36 = arith.constant dense<0.000000e+00> : vector<256x128xf32>
    %34 = tpu.matmul %32, %33, %cst_36 {dimension_numbers = #tpu.dot_dimension_numbers<[1], [0], [0], [1], [0, 0, 1, 1], [], []>} : vector<256x1152xbf16>, vector<1152x128xbf16>, vector<256x128xf32> -> vector<256x128xf32>
    %c0_37 = arith.constant 0 : index
    %c0_38 = arith.constant 0 : index
    %c0_39 = arith.constant 0 : index
    %35 = vector.load %arg3[%c0_37, %c0_38, %c0_39] : memref<1x1x128xf32, #tpu.memory_space<vmem>>, vector<1x1x128xf32>
    %36 = vector.shape_cast %35 : vector<1x1x128xf32> to vector<1x128xf32>
    %37 = vector.broadcast %36 : vector<1x128xf32> to vector<256x128xf32>
    %38 = arith.addf %34, %37 : vector<256x128xf32>
    %39 = vector.shape_cast %38 : vector<256x128xf32> to vector<16x16x128xf32>
    %c0_40 = arith.constant 0 : index
    %c0_41 = arith.constant 0 : index
    %c0_42 = arith.constant 0 : index
    %c0_43 = arith.constant 0 : index
    %40 = vector.load %arg4[%c0_40, %c0_41, %c0_42, %c0_43] : memref<1x16x16x128xf32, #tpu.memory_space<vmem>>, vector<1x16x16x128xf32>
    %41 = vector.shape_cast %40 : vector<1x16x16x128xf32> to vector<16x16x128xf32>
    %42 = vector.shape_cast %39 : vector<16x16x128xf32> to vector<1x16x16x128xf32>
    tpu.vector_store %arg4[%c0_40, %c0_41, %c0_42, %c0_43], %42 {strides = array<i32>} : memref<1x16x16x128xf32, #tpu.memory_space<vmem>>, vector<1x16x16x128xf32>,
    return
  }
  func.func @transform_0(%arg0: i32) -> (i32, i32, i32, i32) {
    %c0_i32 = arith.constant 0 : i32
    %c0_i32_0 = arith.constant 0 : i32
    %c0_i32_1 = arith.constant 0 : i32
    %c0_i32_2 = arith.constant 0 : i32
    return %arg0, %c0_i32, %c0_i32_0, %c0_i32_1 : i32, i32, i32, i32
  }
  func.func @transform_1(%arg0: i32) -> (i32, i32) {
    %c0_i32 = arith.constant 0 : i32
    %c0_i32_0 = arith.constant 0 : i32
    %c0_i32_1 = arith.constant 0 : i32
    return %c0_i32, %c0_i32_0 : i32, i32
  }
  func.func @transform_2(%arg0: i32) -> (i32, i32, i32) {
    %c0_i32 = arith.constant 0 : i32
    %c0_i32_0 = arith.constant 0 : i32
    %c0_i32_1 = arith.constant 0 : i32
    %c0_i32_2 = arith.constant 0 : i32
    return %c0_i32, %c0_i32_0, %c0_i32_1 : i32, i32, i32
  }
  func.func @transform_3(%arg0: i32) -> (i32, i32, i32, i32) {
    %c0_i32 = arith.constant 0 : i32
    %c0_i32_0 = arith.constant 0 : i32
    %c0_i32_1 = arith.constant 0 : i32
    %c0_i32_2 = arith.constant 0 : i32
    return %arg0, %c0_i32, %c0_i32_0, %c0_i32_1 : i32, i32, i32, i32
  }
}

</mosaic_0001>

<llo_original>
// kernel: tpu_custom_call.1
$region0: #{tpu_custom_call.1}
  #allocation0 [shape = 'u32[]', space=smem, size = 0x4, offset = 0x4, fixed_abs, tag = 'smem constant byte address 0x4 - core index']
  #allocation1 [shape = 'u32[72,128]{1,0:T(1,128)}', space=vmem, size = 0x9000, scoped, tag = 'internal scratch']
  #allocation2 [shape = 'f32[18,18,128]{2,1,0:T(8,128)}', space=vmem, size = 0x36000, scoped, tag = 'scratch operand']
  %s0 = inlined_call_operand.hbm [shape: f32[2,16,16,128], index: 0, kind: input, shape index: {}]
  %s1 = inlined_call_operand.hbm [shape: bf16[1152,128], index: 1, kind: input, shape index: {}]
  %s2 = inlined_call_operand.vmem [shape: f32[1,1,128], index: 2, kind: input, shape index: {}]
  %s3 = inlined_call_operand.hbm [shape: f32[2,16,16,128], index: 3, kind: output, shape index: {}]
  %s4 = sld [smem:[#allocation0]]
  $region53: #{tpu_custom_call.1} parent=0
    _
  %s6 = ssub.s32 1, %s4
  %s7 = scalar_select 0, %s6, %s4
  $region1: #{tpu_custom_call.1} parent=0
    #allocation3 [shape = 'u8[262144]{0}', space=vmem, size = 0x40000, scoped, tag = 'input window, operand 0']
    #allocation4 [shape = 's32[2]{0}', space=sflag, size = 0x8, scoped, tag = 'scoped memory for tpu_custom_call.1']
    #allocation5 [shape = 's32[2]{0}', space=sflag, size = 0x8, scoped, tag = 'scoped memory for tpu_custom_call.1']
    #allocation6 [shape = 'u8[294912]{0}', space=vmem, size = 0x48000, scoped, tag = 'input window, operand 1, single buffered']
    #allocation7 [shape = 's32[1]{0}', space=sflag, size = 0x4, scoped, tag = 'scoped memory for tpu_custom_call.1']
    #allocation8 [shape = 'u8[262144]{0}', space=vmem, size = 0x40000, scoped, tag = 'output window, operand 0']
    %8 = vsyncpa [#allocation4], 0
    %s9 = scalar_lea.sflag [#allocation4], 1
    %10 = vsyncpa %s9, 0
    %11 = vsyncpa [#allocation7], 0
    %12 = vsyncpa [#allocation5], 0
    %s13 = scalar_lea.sflag [#allocation5], 1
    %14 = vsyncpa %s13, 0
    loop: start=0, step=1, limit=4
    $region2: #{tpu_custom_call.1} parent=1 // loop_pre_header
      _
    $region3: #{tpu_custom_call.1} parent=1 // loop_header
      %s16 = sphi 0, %s20
      %p17 = scmp.ge.s32.totalorder %s16, 4
      %s26 = sphi 0, %s28
      %s29 = sphi 0, %s26
      %s30 = sphi 0, %s29
      %s46 = sphi 0, %s30
      %s50 = sphi 0, %s50
      %s52 = sphi 0, %s50
      %s53 = sphi 0, %s52
      %s67 = sphi 0, %s53
      %s71 = sphi 0, %s71
      %s73 = sphi 0, %s71
      %s74 = sphi 0, %s73
      %s88 = sphi 0, %s74
      %s94 = sphi 0, %s96
      %s97 = sphi 0, %s94
      %s98 = sphi 0, %s97
      %s114 = sphi 0, %s98
    $region4: #{tpu_custom_call.1} parent=1 // loop_header_branch
      %19 = sbr.rel (%p17) target = $region8
    $region5: #{tpu_custom_call.1} parent=1 // loop_body
      %s21 = ssub.s32 %s16, 1
      %s22 = ssub.s32 %s16, 2
      %s23 = sadd.s32 %s16, 1
      %s24 = ssub.s32 %s16, %s23
      %p25 = scmp.eq.s32.totalorder %s24, 0
      %s27 = sadd.s32 %s26, 1
      %s28 = scalar_select %p25, %s26, %s27
      %p31 = pneg %p25
      %p32 = scmp.eq.s32.totalorder %s16, 1
      %p33 = por %p31, %p32
      %p34 = scmp.ne.s32.totalorder %s26, %s29
      %p35 = scmp.eq.s32.totalorder %s16, 0
      %p36 = por %p34, %p35
      %p37 = scmp.ne.s32.totalorder %s26, %s29
      %p38 = scmp.eq.s32.totalorder %s21, 1
      %p39 = por %p37, %p38
      %p40 = scmp.ne.s32.totalorder %s29, %s30
      %p41 = scmp.eq.s32.totalorder %s21, 0
      %p42 = por %p40, %p41
      %p43 = scmp.ne.s32.totalorder %s29, %s30
      %p44 = scmp.eq.s32.totalorder %s22, 1
      %p45 = por %p43, %p44
      %p47 = scmp.ne.s32.totalorder %s30, %s46
      %p48 = scmp.eq.s32.totalorder %s22, 0
      %p49 = por %p47, %p48
      %s51 = sadd.s32 %s50, 1
      %p54 = scmp.eq.s32.totalorder %s16, 1
      %p55 = scmp.ne.s32.totalorder %s50, %s52
      %p56 = scmp.eq.s32.totalorder %s16, 0
      %p57 = por %p55, %p56
      %p58 = scmp.ne.s32.totalorder %s50, %s52
      %p59 = scmp.eq.s32.totalorder %s21, 1
      %p60 = por %p58, %p59
      %p61 = scmp.ne.s32.totalorder %s52, %s53
      %p62 = scmp.eq.s32.totalorder %s21, 0
      %p63 = por %p61, %p62
      %p64 = scmp.ne.s32.totalorder %s52, %s53
      %p65 = scmp.eq.s32.totalorder %s22, 1
      %p66 = por %p64, %p65
      %p68 = scmp.ne.s32.totalorder %s53, %s67
      %p69 = scmp.eq.s32.totalorder %s22, 0
      %p70 = por %p68, %p69
      %s72 = sadd.s32 %s71, 1
      %p75 = scmp.eq.s32.totalorder %s16, 1
      %p76 = scmp.ne.s32.totalorder %s71, %s73
      %p77 = scmp.eq.s32.totalorder %s16, 0
      %p78 = por %p76, %p77
      %p79 = scmp.ne.s32.totalorder %s71, %s73
      %p80 = scmp.eq.s32.totalorder %s21, 1
      %p81 = por %p79, %p80
      %p82 = scmp.ne.s32.totalorder %s73, %s74
      %p83 = scmp.eq.s32.totalorder %s21, 0
      %p84 = por %p82, %p83
      %p85 = scmp.ne.s32.totalorder %s73, %s74
      %p86 = scmp.eq.s32.totalorder %s22, 1
      %p87 = por %p85, %p86
      %p89 = scmp.ne.s32.totalorder %s74, %s88
      %p90 = scmp.eq.s32.totalorder %s22, 0
      %p91 = por %p89, %p90
      %s92 = ssub.s32 %s16, %s23
      %p93 = scmp.eq.s32.totalorder %s92, 0
      %s95 = sadd.s32 %s94, 1
      %s96 = scalar_select %p93, %s94, %s95
      %p99 = pneg %p93
      %p100 = scmp.eq.s32.totalorder %s16, 1
      %p101 = por %p99, %p100
      %p102 = scmp.ne.s32.totalorder %s94, %s97
      %p103 = scmp.eq.s32.totalorder %s16, 0
      %p104 = por %p102, %p103
      %p105 = scmp.ne.s32.totalorder %s94, %s97
      %p106 = scmp.eq.s32.totalorder %s21, 1
      %p107 = por %p105, %p106
      %p108 = scmp.ne.s32.totalorder %s97, %s98
      %p109 = scmp.eq.s32.totalorder %s21, 0
      %p110 = por %p108, %p109
      %p111 = scmp.ne.s32.totalorder %s97, %s98
      %p112 = scmp.eq.s32.totalorder %s22, 1
      %p113 = por %p111, %p112
      %p115 = scmp.ne.s32.totalorder %s98, %s114
      %p116 = scmp.eq.s32.totalorder %s22, 0
      %p117 = por %p115, %p116
      %p118 = scmp.le.s32.totalorder 1, %s16
      %p119 = scmp.lt.s32.totalorder %s16, 3
      %p120 = pnand %p118, %p119
      %p121 = pneg %p120
      // Predicated region
      $region9: #{tpu_custom_call.1} parent=5 // pred_check
        _
      $region10: #{tpu_custom_call.1} parent=5 // pred_check_branch
        %123 = sbr.rel (%p120) target = $region12
      $region11: #{tpu_custom_call.1} parent=5 // pred_region
        %s124 = ssub.s32 %s16, 1
        // Predicated region
        $region13: #{tpu_custom_call.1} parent=11 // pred_check
          %p125 = pneg %p63
        $region14: #{tpu_custom_call.1} parent=11 // pred_check_branch
          %127 = sbr.rel (%p125) target = $region16
        $region15: #{tpu_custom_call.1} parent=11 // pred_region
          %129 = vsyncadd [#allocation7], 0
          %s130 = sshll.u32 %s1, 4
          %s131 = int_to_ptr.hbm [resolvable:$true] %s130
          %s132 = sshll.u32 [#allocation6], 4
          %s133 = int_to_ptr.vmem [resolvable:$true] %s132
          %138 = dma.hbm_to_vmem [thread:$0]  %s131, 9216, %s133, [#allocation7], 64, 64, 4
        $region16: #{tpu_custom_call.1} parent=11 // pred_fallthru
          _
        // Predicated region
        $region17: #{tpu_custom_call.1} parent=11 // pred_check
          %p139 = pneg %p84
        $region18: #{tpu_custom_call.1} parent=11 // pred_check_branch
          %141 = sbr.rel (%p139) target = $region20
        $region19: #{tpu_custom_call.1} parent=11 // pred_region
          _
        $region20: #{tpu_custom_call.1} parent=11 // pred_fallthru
          _
      $region12: #{tpu_custom_call.1} parent=5 // pred_fallthru
        _
      %p142 = scmp.lt.s32.totalorder %s16, 2
      // Predicated region
      $region21: #{tpu_custom_call.1} parent=5 // pred_check
        %p143 = pneg %p142
      $region22: #{tpu_custom_call.1} parent=5 // pred_check_branch
        %145 = sbr.rel (%p143) target = $region24
      $region23: #{tpu_custom_call.1} parent=5 // pred_region
        // Predicated region
        $region25: #{tpu_custom_call.1} parent=23 // pred_check
          %p146 = pneg %p36
        $region26: #{tpu_custom_call.1} parent=23 // pred_check_branch
          %148 = sbr.rel (%p146) target = $region28
        $region27: #{tpu_custom_call.1} parent=23 // pred_region
          %s149 = sand.u32 %s26, 1
          %s150 = scalar_lea.sflag [#allocation4], %s149
          %s151 = sand.u32 %s26, 1
          %s152 = smul.addr %s151, 256
          %s153 = scalar_lea.vmem [#allocation3], %s152
          %155 = vsyncadd %s150, 0
          %s156 = smul.addr %s16, 32
          %s157 = smul.addr %s156, 8
          %s158 = scalar_lea.hbm %s0, %s157
          %s159 = sshll.u32 %s158, 4
          %s160 = int_to_ptr.hbm [resolvable:$true] %s159
          %s161 = sshll.u32 %s153, 4
          %s162 = int_to_ptr.vmem [resolvable:$true] %s161
          %167 = dma.hbm_to_vmem [thread:$0]  %s160, 4096, %s162, %s150, 128, 128, 8
        $region28: #{tpu_custom_call.1} parent=23 // pred_fallthru
          _
      $region24: #{tpu_custom_call.1} parent=5 // pred_fallthru
        _
      %p168 = scmp.le.s32.totalorder 1, %s16
      %p169 = scmp.lt.s32.totalorder %s16, 3
      %p170 = pnand %p168, %p169
      %p171 = pneg %p170
      // Predicated region
      $region29: #{tpu_custom_call.1} parent=5 // pred_check
        _
      $region30: #{tpu_custom_call.1} parent=5 // pred_check_branch
        %173 = sbr.rel (%p170) target = $region32
      $region31: #{tpu_custom_call.1} parent=5 // pred_region
        %s174 = ssub.s32 %s16, 1
        %s175 = sand.u32 %s29, 1
        %s176 = scalar_lea.sflag [#allocation4], %s175
        %s177 = sand.u32 %s29, 1
        %s178 = smul.addr %s177, 256
        %s179 = scalar_lea.vmem [#allocation3], %s178
        // Predicated region
        $region33: #{tpu_custom_call.1} parent=31 // pred_check
          %p180 = pneg %p42
        $region34: #{tpu_custom_call.1} parent=31 // pred_check_branch
          %182 = sbr.rel (%p180) target = $region36
        $region35: #{tpu_custom_call.1} parent=31 // pred_region
          %184 = dma.done %s176, 4096
        $region36: #{tpu_custom_call.1} parent=31 // pred_fallthru
          _
        // Predicated region
        $region37: #{tpu_custom_call.1} parent=31 // pred_check
          %p185 = pneg %p63
        $region38: #{tpu_custom_call.1} parent=31 // pred_check_branch
          %187 = sbr.rel (%p185) target = $region40
        $region39: #{tpu_custom_call.1} parent=31 // pred_region
          %189 = dma.done [#allocation7], 9216
        $region40: #{tpu_custom_call.1} parent=31 // pred_fallthru
          _
        %s190 = sand.u32 %s29, 1
        %s191 = scalar_lea.sflag [#allocation4], %s190
        %s192 = sand.u32 %s29, 1
        %s193 = smul.addr %s192, 256
        %s194 = scalar_lea.vmem [#allocation3], %s193
        %p195 = pneg %p42
        %p196 = pneg %p39
        %p197 = pneg %p63
        %p198 = pneg %p60
        %p199 = pneg %p84
        %p200 = pneg %p81
        %p201 = pneg %p110
        %p202 = pneg %p107
        %s203 = sand.u32 %s97, 1
        %s204 = scalar_lea.sflag [#allocation5], %s203
        %s205 = sand.u32 %s97, 1
        %s206 = smul.addr %s205, 256
        %s207 = scalar_lea.vmem [#allocation8], %s206
        %208 = vst [vmem:[#allocation2] sm:$0xff] 0.0
        %209 = vst [vmem:[#allocation2 + $0x8] sm:$0xff] 0.0
        %210 = vst [vmem:[#allocation2 + $0x10] sm:$0x3] 0.0
        %211 = vst [vmem:[#allocation2 + $0x18] sm:$0xff] 0.0
        %212 = vst [vmem:[#allocation2 + $0x20] sm:$0xff] 0.0
        %213 = vst [vmem:[#allocation2 + $0x28] sm:$0x3] 0.0
        %214 = vst [vmem:[#allocation2 + $0x30] sm:$0xff] 0.0
        %215 = vst [vmem:[#allocation2 + $0x38] sm:$0xff] 0.0
        %216 = vst [vmem:[#allocation2 + $0x40] sm:$0x3] 0.0
        %217 = vst [vmem:[#allocation2 + $0x48] sm:$0xff] 0.0
        %218 = vst [vmem:[#allocation2 + $0x50] sm:$0xff] 0.0
        %219 = vst [vmem:[#allocation2 + $0x58] sm:$0x3] 0.0
        %220 = vst [vmem:[#allocation2 + $0x60] sm:$0xff] 0.0
        %221 = vst [vmem:[#allocation2 + $0x68] sm:$0xff] 0.0
        %222 = vst [vmem:[#allocation2 + $0x70] sm:$0x3] 0.0
        %223 = vst [vmem:[#allocation2 + $0x78] sm:$0xff] 0.0
        %224 = vst [vmem:[#allocation2 + $0x80] sm:$0xff] 0.0
        %225 = vst [vmem:[#allocation2 + $0x88] sm:$0x3] 0.0
        %226 = vst [vmem:[#allocation2 + $0x90] sm:$0xff] 0.0
        %227 = vst [vmem:[#allocation2 + $0x98] sm:$0xff] 0.0
        %228 = vst [vmem:[#allocation2 + $0xa0] sm:$0x3] 0.0
        %229 = vst [vmem:[#allocation2 + $0xa8] sm:$0xff] 0.0
        %230 = vst [vmem:[#allocation2 + $0xb0] sm:$0xff] 0.0
        %231 = vst [vmem:[#allocation2 + $0xb8] sm:$0x3] 0.0
        %232 = vst [vmem:[#allocation2 + $0xc0] sm:$0xff] 0.0
        %233 = vst [vmem:[#allocation2 + $0xc8] sm:$0xff] 0.0
        %234 = vst [vmem:[#allocation2 + $0xd0] sm:$0x3] 0.0
        %235 = vst [vmem:[#allocation2 + $0xd8] sm:$0xff] 0.0
        %236 = vst [vmem:[#allocation2 + $0xe0] sm:$0xff] 0.0
        %237 = vst [vmem:[#allocation2 + $0xe8] sm:$0x3] 0.0
        %238 = vst [vmem:[#allocation2 + $0xf0] sm:$0xff] 0.0
        %239 = vst [vmem:[#allocation2 + $0xf8] sm:$0xff] 0.0
        %240 = vst [vmem:[#allocation2 + $0x100] sm:$0x3] 0.0
        %241 = vst [vmem:[#allocation2 + $0x108] sm:$0xff] 0.0
        %242 = vst [vmem:[#allocation2 + $0x110] sm:$0xff] 0.0
        %243 = vst [vmem:[#allocation2 + $0x118] sm:$0x3] 0.0
        %244 = vst [vmem:[#allocation2 + $0x120] sm:$0xff] 0.0
        %245 = vst [vmem:[#allocation2 + $0x128] sm:$0xff] 0.0
        %246 = vst [vmem:[#allocation2 + $0x130] sm:$0x3] 0.0
        %247 = vst [vmem:[#allocation2 + $0x138] sm:$0xff] 0.0
        %248 = vst [vmem:[#allocation2 + $0x140] sm:$0xff] 0.0
        %249 = vst [vmem:[#allocation2 + $0x148] sm:$0x3] 0.0
        %250 = vst [vmem:[#allocation2 + $0x150] sm:$0xff] 0.0
        %251 = vst [vmem:[#allocation2 + $0x158] sm:$0xff] 0.0
        %252 = vst [vmem:[#allocation2 + $0x160] sm:$0x3] 0.0
        %253 = vst [vmem:[#allocation2 + $0x168] sm:$0xff] 0.0
        %254 = vst [vmem:[#allocation2 + $0x170] sm:$0xff] 0.0
        %255 = vst [vmem:[#allocation2 + $0x178] sm:$0x3] 0.0
        %256 = vst [vmem:[#allocation2 + $0x180] sm:$0xff] 0.0
        %257 = vst [vmem:[#allocation2 + $0x188] sm:$0xff] 0.0
        %258 = vst [vmem:[#allocation2 + $0x190] sm:$0x3] 0.0
        %259 = vst [vmem:[#allocation2 + $0x198] sm:$0xff] 0.0
        %260 = vst [vmem:[#allocation2 + $0x1a0] sm:$0xff] 0.0
        %261 = vst [vmem:[#allocation2 + $0x1a8] sm:$0x3] 0.0
        %v262 = vld [vmem:[%s179] sm:$0xff]
        %v263 = vld [vmem:[%s179 + $0x8] sm:$0xff]
        %v264 = vld [vmem:[%s179 + $0x10] sm:$0xff]
        %v265 = vld [vmem:[%s179 + $0x18] sm:$0xff]
        %v266 = vld [vmem:[%s179 + $0x20] sm:$0xff]
        %v267 = vld [vmem:[%s179 + $0x28] sm:$0xff]
        %v268 = vld [vmem:[%s179 + $0x30] sm:$0xff]
        %v269 = vld [vmem:[%s179 + $0x38] sm:$0xff]
        %v270 = vld [vmem:[%s179 + $0x40] sm:$0xff]
        %v271 = vld [vmem:[%s179 + $0x48] sm:$0xff]
        %v272 = vld [vmem:[%s179 + $0x50] sm:$0xff]
        %v273 = vld [vmem:[%s179 + $0x58] sm:$0xff]
        %v274 = vld [vmem:[%s179 + $0x60] sm:$0xff]
        %v275 = vld [vmem:[%s179 + $0x68] sm:$0xff]
        %v276 = vld [vmem:[%s179 + $0x70] sm:$0xff]
        %v277 = vld [vmem:[%s179 + $0x78] sm:$0xff]
        %v278 = vld [vmem:[%s179 + $0x80] sm:$0xff]
        %v279 = vld [vmem:[%s179 + $0x88] sm:$0xff]
        %v280 = vld [vmem:[%s179 + $0x90] sm:$0xff]
        %v281 = vld [vmem:[%s179 + $0x98] sm:$0xff]
        %v282 = vld [vmem:[%s179 + $0xa0] sm:$0xff]
        %v283 = vld [vmem:[%s179 + $0xa8] sm:$0xff]
        %v284 = vld [vmem:[%s179 + $0xb0] sm:$0xff]
        %v285 = vld [vmem:[%s179 + $0xb8] sm:$0xff]
        %v286 = vld [vmem:[%s179 + $0xc0] sm:$0xff]
        %v287 = vld [vmem:[%s179 + $0xc8] sm:$0xff]
        %v288 = vld [vmem:[%s179 + $0xd0] sm:$0xff]
        %v289 = vld [vmem:[%s179 + $0xd8] sm:$0xff]
        %v290 = vld [vmem:[%s179 + $0xe0] sm:$0xff]
        %v291 = vld [vmem:[%s179 + $0xe8] sm:$0xff]
        %v292 = vld [vmem:[%s179 + $0xf0] sm:$0xff]
        %v293 = vld [vmem:[%s179 + $0xf8] sm:$0xff]
        %s294 = scalar_lea.vmem [#allocation2], 24
        %295 = vst [vmem:[%s294 + $0x1] sm:$0xff] %v262
        %296 = vst [vmem:[%s294 + $0x9] sm:$0xff] %v263
        %297 = vst [vmem:[%s294 + $0x19] sm:$0xff] %v264
        %298 = vst [vmem:[%s294 + $0x21] sm:$0xff] %v265
        %299 = vst [vmem:[%s294 + $0x31] sm:$0xff] %v266
        %300 = vst [vmem:[%s294 + $0x39] sm:$0xff] %v267
        %301 = vst [vmem:[%s294 + $0x49] sm:$0xff] %v268
        %302 = vst [vmem:[%s294 + $0x51] sm:$0xff] %v269
        %303 = vst [vmem:[%s294 + $0x61] sm:$0xff] %v270
        %304 = vst [vmem:[%s294 + $0x69] sm:$0xff] %v271
        %305 = vst [vmem:[%s294 + $0x79] sm:$0xff] %v272
        %306 = vst [vmem:[%s294 + $0x81] sm:$0xff] %v273
        %307 = vst [vmem:[%s294 + $0x91] sm:$0xff] %v274
        %308 = vst [vmem:[%s294 + $0x99] sm:$0xff] %v275
        %309 = vst [vmem:[%s294 + $0xa9] sm:$0xff] %v276
        %310 = vst [vmem:[%s294 + $0xb1] sm:$0xff] %v277
        %311 = vst [vmem:[%s294 + $0xc1] sm:$0xff] %v278
        %312 = vst [vmem:[%s294 + $0xc9] sm:$0xff] %v279
        %313 = vst [vmem:[%s294 + $0xd9] sm:$0xff] %v280
        %314 = vst [vmem:[%s294 + $0xe1] sm:$0xff] %v281
        %315 = vst [vmem:[%s294 + $0xf1] sm:$0xff] %v282
        %316 = vst [vmem:[%s294 + $0xf9] sm:$0xff] %v283
        %317 = vst [vmem:[%s294 + $0x109] sm:$0xff] %v284
        %318 = vst [vmem:[%s294 + $0x111] sm:$0xff] %v285
        %319 = vst [vmem:[%s294 + $0x121] sm:$0xff] %v286
        %320 = vst [vmem:[%s294 + $0x129] sm:$0xff] %v287
        %321 = vst [vmem:[%s294 + $0x139] sm:$0xff] %v288
        %322 = vst [vmem:[%s294 + $0x141] sm:$0xff] %v289
        %323 = vst [vmem:[%s294 + $0x151] sm:$0xff] %v290
        %324 = vst [vmem:[%s294 + $0x159] sm:$0xff] %v291
        %325 = vst [vmem:[%s294 + $0x169] sm:$0xff] %v292
        %326 = vst [vmem:[%s294 + $0x171] sm:$0xff] %v293
        %v327 = vld [vmem:[#allocation2] sm:$0xff]
        %v328 = vld [vmem:[#allocation2 + $0x8] sm:$0xff]
        %v329 = vld [vmem:[#allocation2 + $0x18] sm:$0xff]
        %v330 = vld [vmem:[#allocation2 + $0x20] sm:$0xff]
        %v331 = vld [vmem:[#allocation2 + $0x30] sm:$0xff]
        %v332 = vld [vmem:[#allocation2 + $0x38] sm:$0xff]
        %v333 = vld [vmem:[#allocation2 + $0x48] sm:$0xff]
        %v334 = vld [vmem:[#allocation2 + $0x50] sm:$0xff]
        %v335 = vld [vmem:[#allocation2 + $0x60] sm:$0xff]
        %v336 = vld [vmem:[#allocation2 + $0x68] sm:$0xff]
        %v337 = vld [vmem:[#allocation2 + $0x78] sm:$0xff]
        %v338 = vld [vmem:[#allocation2 + $0x80] sm:$0xff]
        %v339 = vld [vmem:[#allocation2 + $0x90] sm:$0xff]
        %v340 = vld [vmem:[#allocation2 + $0x98] sm:$0xff]
        %v341 = vld [vmem:[#allocation2 + $0xa8] sm:$0xff]
        %v342 = vld [vmem:[#allocation2 + $0xb0] sm:$0xff]
        %v343 = vld [vmem:[#allocation2 + $0xc0] sm:$0xff]
        %v344 = vld [vmem:[#allocation2 + $0xc8] sm:$0xff]
        %v345 = vld [vmem:[#allocation2 + $0xd8] sm:$0xff]
        %v346 = vld [vmem:[#allocation2 + $0xe0] sm:$0xff]
        %v347 = vld [vmem:[#allocation2 + $0xf0] sm:$0xff]
        %v348 = vld [vmem:[#allocation2 + $0xf8] sm:$0xff]
        %v349 = vld [vmem:[#allocation2 + $0x108] sm:$0xff]
        %v350 = vld [vmem:[#allocation2 + $0x110] sm:$0xff]
        %v351 = vld [vmem:[#allocation2 + $0x120] sm:$0xff]
        %v352 = vld [vmem:[#allocation2 + $0x128] sm:$0xff]
        %v353 = vld [vmem:[#allocation2 + $0x138] sm:$0xff]
        %v354 = vld [vmem:[#allocation2 + $0x140] sm:$0xff]
        %v355 = vld [vmem:[#allocation2 + $0x150] sm:$0xff]
        %v356 = vld [vmem:[#allocation2 + $0x158] sm:$0xff]
        %v357 = vld [vmem:[#allocation2 + $0x168] sm:$0xff]
        %v358 = vld [vmem:[#allocation2 + $0x170] sm:$0xff]
        %v359 = vpack.c.bf16 %v327, %v327
        %v360 = vpack.c.bf16 %v328, %v328
        %v361 = vpack.c.bf16 %v329, %v329
        %v362 = vpack.c.bf16 %v330, %v330
        %v363 = vpack.c.bf16 %v331, %v331
        %v364 = vpack.c.bf16 %v332, %v332
        %v365 = vpack.c.bf16 %v333, %v333
        %v366 = vpack.c.bf16 %v334, %v334
        %v367 = vpack.c.bf16 %v335, %v335
        %v368 = vpack.c.bf16 %v336, %v336
        %v369 = vpack.c.bf16 %v337, %v337
        %v370 = vpack.c.bf16 %v338, %v338
        %v371 = vpack.c.bf16 %v339, %v339
        %v372 = vpack.c.bf16 %v340, %v340
        %v373 = vpack.c.bf16 %v341, %v341
        %v374 = vpack.c.bf16 %v342, %v342
        %v375 = vpack.c.bf16 %v343, %v343
        %v376 = vpack.c.bf16 %v344, %v344
        %v377 = vpack.c.bf16 %v345, %v345
        %v378 = vpack.c.bf16 %v346, %v346
        %v379 = vpack.c.bf16 %v347, %v347
        %v380 = vpack.c.bf16 %v348, %v348
        %v381 = vpack.c.bf16 %v349, %v349
        %v382 = vpack.c.bf16 %v350, %v350
        %v383 = vpack.c.bf16 %v351, %v351
        %v384 = vpack.c.bf16 %v352, %v352
        %v385 = vpack.c.bf16 %v353, %v353
        %v386 = vpack.c.bf16 %v354, %v354
        %v387 = vpack.c.bf16 %v355, %v355
        %v388 = vpack.c.bf16 %v356, %v356
        %v389 = vpack.c.bf16 %v357, %v357
        %v390 = vpack.c.bf16 %v358, %v358
        %v391 = vld [vmem:[#allocation2 + $0x1] sm:$0xff]
        %v392 = vld [vmem:[#allocation2 + $0x9] sm:$0xff]
        %v393 = vld [vmem:[#allocation2 + $0x19] sm:$0xff]
        %v394 = vld [vmem:[#allocation2 + $0x21] sm:$0xff]
        %v395 = vld [vmem:[#allocation2 + $0x31] sm:$0xff]
        %v396 = vld [vmem:[#allocation2 + $0x39] sm:$0xff]
        %v397 = vld [vmem:[#allocation2 + $0x49] sm:$0xff]
        %v398 = vld [vmem:[#allocation2 + $0x51] sm:$0xff]
        %v399 = vld [vmem:[#allocation2 + $0x61] sm:$0xff]
        %v400 = vld [vmem:[#allocation2 + $0x69] sm:$0xff]
        %v401 = vld [vmem:[#allocation2 + $0x79] sm:$0xff]
        %v402 = vld [vmem:[#allocation2 + $0x81] sm:$0xff]
        %v403 = vld [vmem:[#allocation2 + $0x91] sm:$0xff]
        %v404 = vld [vmem:[#allocation2 + $0x99] sm:$0xff]
        %v405 = vld [vmem:[#allocation2 + $0xa9] sm:$0xff]
        %v406 = vld [vmem:[#allocation2 + $0xb1] sm:$0xff]
        %v407 = vld [vmem:[#allocation2 + $0xc1] sm:$0xff]
        %v408 = vld [vmem:[#allocation2 + $0xc9] sm:$0xff]
        %v409 = vld [vmem:[#allocation2 + $0xd9] sm:$0xff]
        %v410 = vld [vmem:[#allocation2 + $0xe1] sm:$0xff]
        %v411 = vld [vmem:[#allocation2 + $0xf1] sm:$0xff]
        %v412 = vld [vmem:[#allocation2 + $0xf9] sm:$0xff]
        %v413 = vld [vmem:[#allocation2 + $0x109] sm:$0xff]
        %v414 = vld [vmem:[#allocation2 + $0x111] sm:$0xff]
        %v415 = vld [vmem:[#allocation2 + $0x121] sm:$0xff]
        %v416 = vld [vmem:[#allocation2 + $0x129] sm:$0xff]
        %v417 = vld [vmem:[#allocation2 + $0x139] sm:$0xff]
        %v418 = vld [vmem:[#allocation2 + $0x141] sm:$0xff]
        %v419 = vld [vmem:[#allocation2 + $0x151] sm:$0xff]
        %v420 = vld [vmem:[#allocation2 + $0x159] sm:$0xff]
        %v421 = vld [vmem:[#allocation2 + $0x169] sm:$0xff]
        %v422 = vld [vmem:[#allocation2 + $0x171] sm:$0xff]
        %v423 = vpack.c.bf16 %v391, %v391
        %v424 = vpack.c.bf16 %v392, %v392
        %v425 = vpack.c.bf16 %v393, %v393
        %v426 = vpack.c.bf16 %v394, %v394
        %v427 = vpack.c.bf16 %v395, %v395
        %v428 = vpack.c.bf16 %v396, %v396
        %v429 = vpack.c.bf16 %v397, %v397
        %v430 = vpack.c.bf16 %v398, %v398
        %v431 = vpack.c.bf16 %v399, %v399
        %v432 = vpack.c.bf16 %v400, %v400
        %v433 = vpack.c.bf16 %v401, %v401
        %v434 = vpack.c.bf16 %v402, %v402
        %v435 = vpack.c.bf16 %v403, %v403
        %v436 = vpack.c.bf16 %v404, %v404
        %v437 = vpack.c.bf16 %v405, %v405
        %v438 = vpack.c.bf16 %v406, %v406
        %v439 = vpack.c.bf16 %v407, %v407
        %v440 = vpack.c.bf16 %v408, %v408
        %v441 = vpack.c.bf16 %v409, %v409
        %v442 = vpack.c.bf16 %v410, %v410
        %v443 = vpack.c.bf16 %v411, %v411
        %v444 = vpack.c.bf16 %v412, %v412
        %v445 = vpack.c.bf16 %v413, %v413
        %v446 = vpack.c.bf16 %v414, %v414
        %v447 = vpack.c.bf16 %v415, %v415
        %v448 = vpack.c.bf16 %v416, %v416
        %v449 = vpack.c.bf16 %v417, %v417
        %v450 = vpack.c.bf16 %v418, %v418
        %v451 = vpack.c.bf16 %v419, %v419
        %v452 = vpack.c.bf16 %v420, %v420
        %v453 = vpack.c.bf16 %v421, %v421
        %v454 = vpack.c.bf16 %v422, %v422
        %v455 = vld [vmem:[#allocation2 + $0x2] sm:$0xff]
        %v456 = vld [vmem:[#allocation2 + $0xa] sm:$0xff]
        %v457 = vld [vmem:[#allocation2 + $0x1a] sm:$0xff]
        %v458 = vld [vmem:[#allocation2 + $0x22] sm:$0xff]
        %v459 = vld [vmem:[#allocation2 + $0x32] sm:$0xff]
        %v460 = vld [vmem:[#allocation2 + $0x3a] sm:$0xff]
        %v461 = vld [vmem:[#allocation2 + $0x4a] sm:$0xff]
        %v462 = vld [vmem:[#allocation2 + $0x52] sm:$0xff]
        %v463 = vld [vmem:[#allocation2 + $0x62] sm:$0xff]
        %v464 = vld [vmem:[#allocation2 + $0x6a] sm:$0xff]
        %v465 = vld [vmem:[#allocation2 + $0x7a] sm:$0xff]
        %v466 = vld [vmem:[#allocation2 + $0x82] sm:$0xff]
        %v467 = vld [vmem:[#allocation2 + $0x92] sm:$0xff]
        %v468 = vld [vmem:[#allocation2 + $0x9a] sm:$0xff]
        %v469 = vld [vmem:[#allocation2 + $0xaa] sm:$0xff]
        %v470 = vld [vmem:[#allocation2 + $0xb2] sm:$0xff]
        %v471 = vld [vmem:[#allocation2 + $0xc2] sm:$0xff]
        %v472 = vld [vmem:[#allocation2 + $0xca] sm:$0xff]
        %v473 = vld [vmem:[#allocation2 + $0xda] sm:$0xff]
        %v474 = vld [vmem:[#allocation2 + $0xe2] sm:$0xff]
        %v475 = vld [vmem:[#allocation2 + $0xf2] sm:$0xff]
        %v476 = vld [vmem:[#allocation2 + $0xfa] sm:$0xff]
        %v477 = vld [vmem:[#allocation2 + $0x10a] sm:$0xff]
        %v478 = vld [vmem:[#allocation2 + $0x112] sm:$0xff]
        %v479 = vld [vmem:[#allocation2 + $0x122] sm:$0xff]
        %v480 = vld [vmem:[#allocation2 + $0x12a] sm:$0xff]
        %v481 = vld [vmem:[#allocation2 + $0x13a] sm:$0xff]
        %v482 = vld [vmem:[#allocation2 + $0x142] sm:$0xff]
        %v483 = vld [vmem:[#allocation2 + $0x152] sm:$0xff]
        %v484 = vld [vmem:[#allocation2 + $0x15a] sm:$0xff]
        %v485 = vld [vmem:[#allocation2 + $0x16a] sm:$0xff]
        %v486 = vld [vmem:[#allocation2 + $0x172] sm:$0xff]
        %v487 = vpack.c.bf16 %v455, %v455
        %v488 = vpack.c.bf16 %v456, %v456
        %v489 = vpack.c.bf16 %v457, %v457
        %v490 = vpack.c.bf16 %v458, %v458
        %v491 = vpack.c.bf16 %v459, %v459
        %v492 = vpack.c.bf16 %v460, %v460
        %v493 = vpack.c.bf16 %v461, %v461
        %v494 = vpack.c.bf16 %v462, %v462
        %v495 = vpack.c.bf16 %v463, %v463
        %v496 = vpack.c.bf16 %v464, %v464
        %v497 = vpack.c.bf16 %v465, %v465
        %v498 = vpack.c.bf16 %v466, %v466
        %v499 = vpack.c.bf16 %v467, %v467
        %v500 = vpack.c.bf16 %v468, %v468
        %v501 = vpack.c.bf16 %v469, %v469
        %v502 = vpack.c.bf16 %v470, %v470
        %v503 = vpack.c.bf16 %v471, %v471
        %v504 = vpack.c.bf16 %v472, %v472
        %v505 = vpack.c.bf16 %v473, %v473
        %v506 = vpack.c.bf16 %v474, %v474
        %v507 = vpack.c.bf16 %v475, %v475
        %v508 = vpack.c.bf16 %v476, %v476
        %v509 = vpack.c.bf16 %v477, %v477
        %v510 = vpack.c.bf16 %v478, %v478
        %v511 = vpack.c.bf16 %v479, %v479
        %v512 = vpack.c.bf16 %v480, %v480
        %v513 = vpack.c.bf16 %v481, %v481
        %v514 = vpack.c.bf16 %v482, %v482
        %v515 = vpack.c.bf16 %v483, %v483
        %v516 = vpack.c.bf16 %v484, %v484
        %v517 = vpack.c.bf16 %v485, %v485
        %v518 = vpack.c.bf16 %v486, %v486
        %v519 = vld [vmem:[%s294] sm:$0xff]
        %v520 = vld [vmem:[%s294 + $0x8] sm:$0xff]
        %v521 = vld [vmem:[%s294 + $0x18] sm:$0xff]
        %v522 = vld [vmem:[%s294 + $0x20] sm:$0xff]
        %v523 = vld [vmem:[%s294 + $0x30] sm:$0xff]
        %v524 = vld [vmem:[%s294 + $0x38] sm:$0xff]
        %v525 = vld [vmem:[%s294 + $0x48] sm:$0xff]
        %v526 = vld [vmem:[%s294 + $0x50] sm:$0xff]
        %v527 = vld [vmem:[%s294 + $0x60] sm:$0xff]
        %v528 = vld [vmem:[%s294 + $0x68] sm:$0xff]
        %v529 = vld [vmem:[%s294 + $0x78] sm:$0xff]
        %v530 = vld [vmem:[%s294 + $0x80] sm:$0xff]
        %v531 = vld [vmem:[%s294 + $0x90] sm:$0xff]
        %v532 = vld [vmem:[%s294 + $0x98] sm:$0xff]
        %v533 = vld [vmem:[%s294 + $0xa8] sm:$0xff]
        %v534 = vld [vmem:[%s294 + $0xb0] sm:$0xff]
        %v535 = vld [vmem:[%s294 + $0xc0] sm:$0xff]
        %v536 = vld [vmem:[%s294 + $0xc8] sm:$0xff]
        %v537 = vld [vmem:[%s294 + $0xd8] sm:$0xff]
        %v538 = vld [vmem:[%s294 + $0xe0] sm:$0xff]
        %v539 = vld [vmem:[%s294 + $0xf0] sm:$0xff]
        %v540 = vld [vmem:[%s294 + $0xf8] sm:$0xff]
        %v541 = vld [vmem:[%s294 + $0x108] sm:$0xff]
        %v542 = vld [vmem:[%s294 + $0x110] sm:$0xff]
        %v543 = vld [vmem:[%s294 + $0x120] sm:$0xff]
        %v544 = vld [vmem:[%s294 + $0x128] sm:$0xff]
        %v545 = vld [vmem:[%s294 + $0x138] sm:$0xff]
        %v546 = vld [vmem:[%s294 + $0x140] sm:$0xff]
        %v547 = vld [vmem:[%s294 + $0x150] sm:$0xff]
        %v548 = vld [vmem:[%s294 + $0x158] sm:$0xff]
        %v549 = vld [vmem:[%s294 + $0x168] sm:$0xff]
        %v550 = vld [vmem:[%s294 + $0x170] sm:$0xff]
        %v551 = vpack.c.bf16 %v519, %v519
        %v552 = vpack.c.bf16 %v520, %v520
        %v553 = vpack.c.bf16 %v521, %v521
        %v554 = vpack.c.bf16 %v522, %v522
        %v555 = vpack.c.bf16 %v523, %v523
        %v556 = vpack.c.bf16 %v524, %v524
        %v557 = vpack.c.bf16 %v525, %v525
        %v558 = vpack.c.bf16 %v526, %v526
        %v559 = vpack.c.bf16 %v527, %v527
        %v560 = vpack.c.bf16 %v528, %v528
        %v561 = vpack.c.bf16 %v529, %v529
        %v562 = vpack.c.bf16 %v530, %v530
        %v563 = vpack.c.bf16 %v531, %v531
        %v564 = vpack.c.bf16 %v532, %v532
        %v565 = vpack.c.bf16 %v533, %v533
        %v566 = vpack.c.bf16 %v534, %v534
        %v567 = vpack.c.bf16 %v535, %v535
        %v568 = vpack.c.bf16 %v536, %v536
        %v569 = vpack.c.bf16 %v537, %v537
        %v570 = vpack.c.bf16 %v538, %v538
        %v571 = vpack.c.bf16 %v539, %v539
        %v572 = vpack.c.bf16 %v540, %v540
        %v573 = vpack.c.bf16 %v541, %v541
        %v574 = vpack.c.bf16 %v542, %v542
        %v575 = vpack.c.bf16 %v543, %v543
        %v576 = vpack.c.bf16 %v544, %v544
        %v577 = vpack.c.bf16 %v545, %v545
        %v578 = vpack.c.bf16 %v546, %v546
        %v579 = vpack.c.bf16 %v547, %v547
        %v580 = vpack.c.bf16 %v548, %v548
        %v581 = vpack.c.bf16 %v549, %v549
        %v582 = vpack.c.bf16 %v550, %v550
        %v583 = vld [vmem:[%s294 + $0x1] sm:$0xff]
        %v584 = vld [vmem:[%s294 + $0x9] sm:$0xff]
        %v585 = vld [vmem:[%s294 + $0x19] sm:$0xff]
        %v586 = vld [vmem:[%s294 + $0x21] sm:$0xff]
        %v587 = vld [vmem:[%s294 + $0x31] sm:$0xff]
        %v588 = vld [vmem:[%s294 + $0x39] sm:$0xff]
        %v589 = vld [vmem:[%s294 + $0x49] sm:$0xff]
        %v590 = vld [vmem:[%s294 + $0x51] sm:$0xff]
        %v591 = vld [vmem:[%s294 + $0x61] sm:$0xff]
        %v592 = vld [vmem:[%s294 + $0x69] sm:$0xff]
        %v593 = vld [vmem:[%s294 + $0x79] sm:$0xff]
        %v594 = vld [vmem:[%s294 + $0x81] sm:$0xff]
        %v595 = vld [vmem:[%s294 + $0x91] sm:$0xff]
        %v596 = vld [vmem:[%s294 + $0x99] sm:$0xff]
        %v597 = vld [vmem:[%s294 + $0xa9] sm:$0xff]
        %v598 = vld [vmem:[%s294 + $0xb1] sm:$0xff]
        %v599 = vld [vmem:[%s294 + $0xc1] sm:$0xff]
        %v600 = vld [vmem:[%s294 + $0xc9] sm:$0xff]
        %v601 = vld [vmem:[%s294 + $0xd9] sm:$0xff]
        %v602 = vld [vmem:[%s294 + $0xe1] sm:$0xff]
        %v603 = vld [vmem:[%s294 + $0xf1] sm:$0xff]
        %v604 = vld [vmem:[%s294 + $0xf9] sm:$0xff]
        %v605 = vld [vmem:[%s294 + $0x109] sm:$0xff]
        %v606 = vld [vmem:[%s294 + $0x111] sm:$0xff]
        %v607 = vld [vmem:[%s294 + $0x121] sm:$0xff]
        %v608 = vld [vmem:[%s294 + $0x129] sm:$0xff]
        %v609 = vld [vmem:[%s294 + $0x139] sm:$0xff]
        %v610 = vld [vmem:[%s294 + $0x141] sm:$0xff]
        %v611 = vld [vmem:[%s294 + $0x151] sm:$0xff]
        %v612 = vld [vmem:[%s294 + $0x159] sm:$0xff]
        %v613 = vld [vmem:[%s294 + $0x169] sm:$0xff]
        %v614 = vld [vmem:[%s294 + $0x171] sm:$0xff]
        %v615 = vpack.c.bf16 %v583, %v583
        %v616 = vpack.c.bf16 %v584, %v584
        %v617 = vpack.c.bf16 %v585, %v585
        %v618 = vpack.c.bf16 %v586, %v586
        %v619 = vpack.c.bf16 %v587, %v587
        %v620 = vpack.c.bf16 %v588, %v588
        %v621 = vpack.c.bf16 %v589, %v589
        %v622 = vpack.c.bf16 %v590, %v590
        %v623 = vpack.c.bf16 %v591, %v591
        %v624 = vpack.c.bf16 %v592, %v592
        %v625 = vpack.c.bf16 %v593, %v593
        %v626 = vpack.c.bf16 %v594, %v594
        %v627 = vpack.c.bf16 %v595, %v595
        %v628 = vpack.c.bf16 %v596, %v596
        %v629 = vpack.c.bf16 %v597, %v597
        %v630 = vpack.c.bf16 %v598, %v598
        %v631 = vpack.c.bf16 %v599, %v599
        %v632 = vpack.c.bf16 %v600, %v600
        %v633 = vpack.c.bf16 %v601, %v601
        %v634 = vpack.c.bf16 %v602, %v602
        %v635 = vpack.c.bf16 %v603, %v603
        %v636 = vpack.c.bf16 %v604, %v604
        %v637 = vpack.c.bf16 %v605, %v605
        %v638 = vpack.c.bf16 %v606, %v606
        %v639 = vpack.c.bf16 %v607, %v607
        %v640 = vpack.c.bf16 %v608, %v608
        %v641 = vpack.c.bf16 %v609, %v609
        %v642 = vpack.c.bf16 %v610, %v610
        %v643 = vpack.c.bf16 %v611, %v611
        %v644 = vpack.c.bf16 %v612, %v612
        %v645 = vpack.c.bf16 %v613, %v613
        %v646 = vpack.c.bf16 %v614, %v614
        %v647 = vld [vmem:[%s294 + $0x2] sm:$0xff]
        %v648 = vld [vmem:[%s294 + $0xa] sm:$0xff]
        %v649 = vld [vmem:[%s294 + $0x1a] sm:$0xff]
        %v650 = vld [vmem:[%s294 + $0x22] sm:$0xff]
        %v651 = vld [vmem:[%s294 + $0x32] sm:$0xff]
        %v652 = vld [vmem:[%s294 + $0x3a] sm:$0xff]
        %v653 = vld [vmem:[%s294 + $0x4a] sm:$0xff]
        %v654 = vld [vmem:[%s294 + $0x52] sm:$0xff]
        %v655 = vld [vmem:[%s294 + $0x62] sm:$0xff]
        %v656 = vld [vmem:[%s294 + $0x6a] sm:$0xff]
        %v657 = vld [vmem:[%s294 + $0x7a] sm:$0xff]
        %v658 = vld [vmem:[%s294 + $0x82] sm:$0xff]
        %v659 = vld [vmem:[%s294 + $0x92] sm:$0xff]
        %v660 = vld [vmem:[%s294 + $0x9a] sm:$0xff]
        %v661 = vld [vmem:[%s294 + $0xaa] sm:$0xff]
        %v662 = vld [vmem:[%s294 + $0xb2] sm:$0xff]
        %v663 = vld [vmem:[%s294 + $0xc2] sm:$0xff]
        %v664 = vld [vmem:[%s294 + $0xca] sm:$0xff]
        %v665 = vld [vmem:[%s294 + $0xda] sm:$0xff]
        %v666 = vld [vmem:[%s294 + $0xe2] sm:$0xff]
        %v667 = vld [vmem:[%s294 + $0xf2] sm:$0xff]
        %v668 = vld [vmem:[%s294 + $0xfa] sm:$0xff]
        %v669 = vld [vmem:[%s294 + $0x10a] sm:$0xff]
        %v670 = vld [vmem:[%s294 + $0x112] sm:$0xff]
        %v671 = vld [vmem:[%s294 + $0x122] sm:$0xff]
        %v672 = vld [vmem:[%s294 + $0x12a] sm:$0xff]
        %v673 = vld [vmem:[%s294 + $0x13a] sm:$0xff]
        %v674 = vld [vmem:[%s294 + $0x142] sm:$0xff]
        %v675 = vld [vmem:[%s294 + $0x152] sm:$0xff]
        %v676 = vld [vmem:[%s294 + $0x15a] sm:$0xff]
        %v677 = vld [vmem:[%s294 + $0x16a] sm:$0xff]
        %v678 = vld [vmem:[%s294 + $0x172] sm:$0xff]
        %v679 = vpack.c.bf16 %v647, %v647
        %v680 = vpack.c.bf16 %v648, %v648
        %v681 = vpack.c.bf16 %v649, %v649
        %v682 = vpack.c.bf16 %v650, %v650
        %v683 = vpack.c.bf16 %v651, %v651
        %v684 = vpack.c.bf16 %v652, %v652
        %v685 = vpack.c.bf16 %v653, %v653
        %v686 = vpack.c.bf16 %v654, %v654
        %v687 = vpack.c.bf16 %v655, %v655
        %v688 = vpack.c.bf16 %v656, %v656
        %v689 = vpack.c.bf16 %v657, %v657
        %v690 = vpack.c.bf16 %v658, %v658
        %v691 = vpack.c.bf16 %v659, %v659
        %v692 = vpack.c.bf16 %v660, %v660
        %v693 = vpack.c.bf16 %v661, %v661
        %v694 = vpack.c.bf16 %v662, %v662
        %v695 = vpack.c.bf16 %v663, %v663
        %v696 = vpack.c.bf16 %v664, %v664
        %v697 = vpack.c.bf16 %v665, %v665
        %v698 = vpack.c.bf16 %v666, %v666
        %v699 = vpack.c.bf16 %v667, %v667
        %v700 = vpack.c.bf16 %v668, %v668
        %v701 = vpack.c.bf16 %v669, %v669
        %v702 = vpack.c.bf16 %v670, %v670
        %v703 = vpack.c.bf16 %v671, %v671
        %v704 = vpack.c.bf16 %v672, %v672
        %v705 = vpack.c.bf16 %v673, %v673
        %v706 = vpack.c.bf16 %v674, %v674
        %v707 = vpack.c.bf16 %v675, %v675
        %v708 = vpack.c.bf16 %v676, %v676
        %v709 = vpack.c.bf16 %v677, %v677
        %v710 = vpack.c.bf16 %v678, %v678
        %s711 = scalar_lea.vmem [#allocation2], 48
        %v712 = vld [vmem:[%s711] sm:$0xff]
        %v713 = vld [vmem:[%s711 + $0x8] sm:$0xff]
        %v714 = vld [vmem:[%s711 + $0x18] sm:$0xff]
        %v715 = vld [vmem:[%s711 + $0x20] sm:$0xff]
        %v716 = vld [vmem:[%s711 + $0x30] sm:$0xff]
        %v717 = vld [vmem:[%s711 + $0x38] sm:$0xff]
        %v718 = vld [vmem:[%s711 + $0x48] sm:$0xff]
        %v719 = vld [vmem:[%s711 + $0x50] sm:$0xff]
        %v720 = vld [vmem:[%s711 + $0x60] sm:$0xff]
        %v721 = vld [vmem:[%s711 + $0x68] sm:$0xff]
        %v722 = vld [vmem:[%s711 + $0x78] sm:$0xff]
        %v723 = vld [vmem:[%s711 + $0x80] sm:$0xff]
        %v724 = vld [vmem:[%s711 + $0x90] sm:$0xff]
        %v725 = vld [vmem:[%s711 + $0x98] sm:$0xff]
        %v726 = vld [vmem:[%s711 + $0xa8] sm:$0xff]
        %v727 = vld [vmem:[%s711 + $0xb0] sm:$0xff]
        %v728 = vld [vmem:[%s711 + $0xc0] sm:$0xff]
        %v729 = vld [vmem:[%s711 + $0xc8] sm:$0xff]
        %v730 = vld [vmem:[%s711 + $0xd8] sm:$0xff]
        %v731 = vld [vmem:[%s711 + $0xe0] sm:$0xff]
        %v732 = vld [vmem:[%s711 + $0xf0] sm:$0xff]
        %v733 = vld [vmem:[%s711 + $0xf8] sm:$0xff]
        %v734 = vld [vmem:[%s711 + $0x108] sm:$0xff]
        %v735 = vld [vmem:[%s711 + $0x110] sm:$0xff]
        %v736 = vld [vmem:[%s711 + $0x120] sm:$0xff]
        %v737 = vld [vmem:[%s711 + $0x128] sm:$0xff]
        %v738 = vld [vmem:[%s711 + $0x138] sm:$0xff]
        %v739 = vld [vmem:[%s711 + $0x140] sm:$0xff]
        %v740 = vld [vmem:[%s711 + $0x150] sm:$0xff]
        %v741 = vld [vmem:[%s711 + $0x158] sm:$0xff]
        %v742 = vld [vmem:[%s711 + $0x168] sm:$0xff]
        %v743 = vld [vmem:[%s711 + $0x170] sm:$0xff]
        %v744 = vpack.c.bf16 %v712, %v712
        %v745 = vpack.c.bf16 %v713, %v713
        %v746 = vpack.c.bf16 %v714, %v714
        %v747 = vpack.c.bf16 %v715, %v715
        %v748 = vpack.c.bf16 %v716, %v716
        %v749 = vpack.c.bf16 %v717, %v717
        %v750 = vpack.c.bf16 %v718, %v718
        %v751 = vpack.c.bf16 %v719, %v719
        %v752 = vpack.c.bf16 %v720, %v720
        %v753 = vpack.c.bf16 %v721, %v721
        %v754 = vpack.c.bf16 %v722, %v722
        %v755 = vpack.c.bf16 %v723, %v723
        %v756 = vpack.c.bf16 %v724, %v724
        %v757 = vpack.c.bf16 %v725, %v725
        %v758 = vpack.c.bf16 %v726, %v726
        %v759 = vpack.c.bf16 %v727, %v727
        %v760 = vpack.c.bf16 %v728, %v728
        %v761 = vpack.c.bf16 %v729, %v729
        %v762 = vpack.c.bf16 %v730, %v730
        %v763 = vpack.c.bf16 %v731, %v731
        %v764 = vpack.c.bf16 %v732, %v732
        %v765 = vpack.c.bf16 %v733, %v733
        %v766 = vpack.c.bf16 %v734, %v734
        %v767 = vpack.c.bf16 %v735, %v735
        %v768 = vpack.c.bf16 %v736, %v736
        %v769 = vpack.c.bf16 %v737, %v737
        %v770 = vpack.c.bf16 %v738, %v738
        %v771 = vpack.c.bf16 %v739, %v739
        %v772 = vpack.c.bf16 %v740, %v740
        %v773 = vpack.c.bf16 %v741, %v741
        %v774 = vpack.c.bf16 %v742, %v742
        %v775 = vpack.c.bf16 %v743, %v743
        %v776 = vld [vmem:[%s711 + $0x1] sm:$0xff]
        %v777 = vld [vmem:[%s711 + $0x9] sm:$0xff]
        %v778 = vld [vmem:[%s711 + $0x19] sm:$0xff]
        %v779 = vld [vmem:[%s711 + $0x21] sm:$0xff]
        %v780 = vld [vmem:[%s711 + $0x31] sm:$0xff]
        %v781 = vld [vmem:[%s711 + $0x39] sm:$0xff]
        %v782 = vld [vmem:[%s711 + $0x49] sm:$0xff]
        %v783 = vld [vmem:[%s711 + $0x51] sm:$0xff]
        %v784 = vld [vmem:[%s711 + $0x61] sm:$0xff]
        %v785 = vld [vmem:[%s711 + $0x69] sm:$0xff]
        %v786 = vld [vmem:[%s711 + $0x79] sm:$0xff]
        %v787 = vld [vmem:[%s711 + $0x81] sm:$0xff]
        %v788 = vld [vmem:[%s711 + $0x91] sm:$0xff]
        %v789 = vld [vmem:[%s711 + $0x99] sm:$0xff]
        %v790 = vld [vmem:[%s711 + $0xa9] sm:$0xff]
        %v791 = vld [vmem:[%s711 + $0xb1] sm:$0xff]
        %v792 = vld [vmem:[%s711 + $0xc1] sm:$0xff]
        %v793 = vld [vmem:[%s711 + $0xc9] sm:$0xff]
        %v794 = vld [vmem:[%s711 + $0xd9] sm:$0xff]
        %v795 = vld [vmem:[%s711 + $0xe1] sm:$0xff]
        %v796 = vld [vmem:[%s711 + $0xf1] sm:$0xff]
        %v797 = vld [vmem:[%s711 + $0xf9] sm:$0xff]
        %v798 = vld [vmem:[%s711 + $0x109] sm:$0xff]
        %v799 = vld [vmem:[%s711 + $0x111] sm:$0xff]
        %v800 = vld [vmem:[%s711 + $0x121] sm:$0xff]
        %v801 = vld [vmem:[%s711 + $0x129] sm:$0xff]
        %v802 = vld [vmem:[%s711 + $0x139] sm:$0xff]
        %v803 = vld [vmem:[%s711 + $0x141] sm:$0xff]
        %v804 = vld [vmem:[%s711 + $0x151] sm:$0xff]
        %v805 = vld [vmem:[%s711 + $0x159] sm:$0xff]
        %v806 = vld [vmem:[%s711 + $0x169] sm:$0xff]
        %v807 = vld [vmem:[%s711 + $0x171] sm:$0xff]
        %v808 = vpack.c.bf16 %v776, %v776
        %v809 = vpack.c.bf16 %v777, %v777
        %v810 = vpack.c.bf16 %v778, %v778
        %v811 = vpack.c.bf16 %v779, %v779
        %v812 = vpack.c.bf16 %v780, %v780
        %v813 = vpack.c.bf16 %v781, %v781
        %v814 = vpack.c.bf16 %v782, %v782
        %v815 = vpack.c.bf16 %v783, %v783
        %v816 = vpack.c.bf16 %v784, %v784
        %v817 = vpack.c.bf16 %v785, %v785
        %v818 = vpack.c.bf16 %v786, %v786
        %v819 = vpack.c.bf16 %v787, %v787
        %v820 = vpack.c.bf16 %v788, %v788
        %v821 = vpack.c.bf16 %v789, %v789
        %v822 = vpack.c.bf16 %v790, %v790
        %v823 = vpack.c.bf16 %v791, %v791
        %v824 = vpack.c.bf16 %v792, %v792
        %v825 = vpack.c.bf16 %v793, %v793
        %v826 = vpack.c.bf16 %v794, %v794
        %v827 = vpack.c.bf16 %v795, %v795
        %v828 = vpack.c.bf16 %v796, %v796
        %v829 = vpack.c.bf16 %v797, %v797
        %v830 = vpack.c.bf16 %v798, %v798
        %v831 = vpack.c.bf16 %v799, %v799
        %v832 = vpack.c.bf16 %v800, %v800
        %v833 = vpack.c.bf16 %v801, %v801
        %v834 = vpack.c.bf16 %v802, %v802
        %v835 = vpack.c.bf16 %v803, %v803
        %v836 = vpack.c.bf16 %v804, %v804
        %v837 = vpack.c.bf16 %v805, %v805
        %v838 = vpack.c.bf16 %v806, %v806
        %v839 = vpack.c.bf16 %v807, %v807
        %v840 = vld [vmem:[%s711 + $0x2] sm:$0xff]
        %v841 = vld [vmem:[%s711 + $0xa] sm:$0xff]
        %v842 = vld [vmem:[%s711 + $0x1a] sm:$0xff]
        %v843 = vld [vmem:[%s711 + $0x22] sm:$0xff]
        %v844 = vld [vmem:[%s711 + $0x32] sm:$0xff]
        %v845 = vld [vmem:[%s711 + $0x3a] sm:$0xff]
        %v846 = vld [vmem:[%s711 + $0x4a] sm:$0xff]
        %v847 = vld [vmem:[%s711 + $0x52] sm:$0xff]
        %v848 = vld [vmem:[%s711 + $0x62] sm:$0xff]
        %v849 = vld [vmem:[%s711 + $0x6a] sm:$0xff]
        %v850 = vld [vmem:[%s711 + $0x7a] sm:$0xff]
        %v851 = vld [vmem:[%s711 + $0x82] sm:$0xff]
        %v852 = vld [vmem:[%s711 + $0x92] sm:$0xff]
        %v853 = vld [vmem:[%s711 + $0x9a] sm:$0xff]
        %v854 = vld [vmem:[%s711 + $0xaa] sm:$0xff]
        %v855 = vld [vmem:[%s711 + $0xb2] sm:$0xff]
        %v856 = vld [vmem:[%s711 + $0xc2] sm:$0xff]
        %v857 = vld [vmem:[%s711 + $0xca] sm:$0xff]
        %v858 = vld [vmem:[%s711 + $0xda] sm:$0xff]
        %v859 = vld [vmem:[%s711 + $0xe2] sm:$0xff]
        %v860 = vld [vmem:[%s711 + $0xf2] sm:$0xff]
        %v861 = vld [vmem:[%s711 + $0xfa] sm:$0xff]
        %v862 = vld [vmem:[%s711 + $0x10a] sm:$0xff]
        %v863 = vld [vmem:[%s711 + $0x112] sm:$0xff]
        %v864 = vld [vmem:[%s711 + $0x122] sm:$0xff]
        %v865 = vld [vmem:[%s711 + $0x12a] sm:$0xff]
        %v866 = vld [vmem:[%s711 + $0x13a] sm:$0xff]
        %v867 = vld [vmem:[%s711 + $0x142] sm:$0xff]
        %v868 = vld [vmem:[%s711 + $0x152] sm:$0xff]
        %v869 = vld [vmem:[%s711 + $0x15a] sm:$0xff]
        %v870 = vld [vmem:[%s711 + $0x16a] sm:$0xff]
        %v871 = vld [vmem:[%s711 + $0x172] sm:$0xff]
        %v872 = vpack.c.bf16 %v840, %v840
        %v873 = vpack.c.bf16 %v841, %v841
        %v874 = vpack.c.bf16 %v842, %v842
        %v875 = vpack.c.bf16 %v843, %v843
        %v876 = vpack.c.bf16 %v844, %v844
        %v877 = vpack.c.bf16 %v845, %v845
        %v878 = vpack.c.bf16 %v846, %v846
        %v879 = vpack.c.bf16 %v847, %v847
        %v880 = vpack.c.bf16 %v848, %v848
        %v881 = vpack.c.bf16 %v849, %v849
        %v882 = vpack.c.bf16 %v850, %v850
        %v883 = vpack.c.bf16 %v851, %v851
        %v884 = vpack.c.bf16 %v852, %v852
        %v885 = vpack.c.bf16 %v853, %v853
        %v886 = vpack.c.bf16 %v854, %v854
        %v887 = vpack.c.bf16 %v855, %v855
        %v888 = vpack.c.bf16 %v856, %v856
        %v889 = vpack.c.bf16 %v857, %v857
        %v890 = vpack.c.bf16 %v858, %v858
        %v891 = vpack.c.bf16 %v859, %v859
        %v892 = vpack.c.bf16 %v860, %v860
        %v893 = vpack.c.bf16 %v861, %v861
        %v894 = vpack.c.bf16 %v862, %v862
        %v895 = vpack.c.bf16 %v863, %v863
        %v896 = vpack.c.bf16 %v864, %v864
        %v897 = vpack.c.bf16 %v865, %v865
        %v898 = vpack.c.bf16 %v866, %v866
        %v899 = vpack.c.bf16 %v867, %v867
        %v900 = vpack.c.bf16 %v868, %v868
        %v901 = vpack.c.bf16 %v869, %v869
        %v902 = vpack.c.bf16 %v870, %v870
        %v903 = vpack.c.bf16 %v871, %v871
        %v936 = vunpack.c.l.b16 %v359
        %v937 = vunpack.c.l.b16 %v360
        %v938 = vunpack.c.l.b16 %v361
        %v939 = vunpack.c.l.b16 %v362
        %v940 = vunpack.c.l.b16 %v363
        %v941 = vunpack.c.l.b16 %v364
        %v942 = vunpack.c.l.b16 %v365
        %v943 = vunpack.c.l.b16 %v366
        %v944 = vunpack.c.l.b16 %v367
        %v945 = vunpack.c.l.b16 %v368
        %v946 = vunpack.c.l.b16 %v369
        %v947 = vunpack.c.l.b16 %v370
        %v948 = vunpack.c.l.b16 %v371
        %v949 = vunpack.c.l.b16 %v372
        %v950 = vunpack.c.l.b16 %v373
        %v951 = vunpack.c.l.b16 %v374
        %v952 = vunpack.c.l.b16 %v375
        %v953 = vunpack.c.l.b16 %v376
        %v954 = vunpack.c.l.b16 %v377
        %v955 = vunpack.c.l.b16 %v378
        %v956 = vunpack.c.l.b16 %v379
        %v957 = vunpack.c.l.b16 %v380
        %v958 = vunpack.c.l.b16 %v381
        %v959 = vunpack.c.l.b16 %v382
        %v960 = vunpack.c.l.b16 %v383
        %v961 = vunpack.c.l.b16 %v384
        %v962 = vunpack.c.l.b16 %v385
        %v963 = vunpack.c.l.b16 %v386
        %v964 = vunpack.c.l.b16 %v387
        %v965 = vunpack.c.l.b16 %v388
        %v966 = vunpack.c.l.b16 %v389
        %v967 = vunpack.c.l.b16 %v390
        %v968 = vpack.c.b16 %v937, %v936
        %v969 = vpack.c.b16 %v939, %v938
        %v970 = vpack.c.b16 %v941, %v940
        %v971 = vpack.c.b16 %v943, %v942
        %v972 = vpack.c.b16 %v945, %v944
        %v973 = vpack.c.b16 %v947, %v946
        %v974 = vpack.c.b16 %v949, %v948
        %v975 = vpack.c.b16 %v951, %v950
        %v976 = vpack.c.b16 %v953, %v952
        %v977 = vpack.c.b16 %v955, %v954
        %v978 = vpack.c.b16 %v957, %v956
        %v979 = vpack.c.b16 %v959, %v958
        %v980 = vpack.c.b16 %v961, %v960
        %v981 = vpack.c.b16 %v963, %v962
        %v982 = vpack.c.b16 %v965, %v964
        %v983 = vpack.c.b16 %v967, %v966
        %v1032 = vunpack.c.l.b16 %v423
        %v1033 = vunpack.c.l.b16 %v424
        %v1034 = vunpack.c.l.b16 %v425
        %v1035 = vunpack.c.l.b16 %v426
        %v1036 = vunpack.c.l.b16 %v427
        %v1037 = vunpack.c.l.b16 %v428
        %v1038 = vunpack.c.l.b16 %v429
        %v1039 = vunpack.c.l.b16 %v430
        %v1040 = vunpack.c.l.b16 %v431
        %v1041 = vunpack.c.l.b16 %v432
        %v1042 = vunpack.c.l.b16 %v433
        %v1043 = vunpack.c.l.b16 %v434
        %v1044 = vunpack.c.l.b16 %v435
        %v1045 = vunpack.c.l.b16 %v436
        %v1046 = vunpack.c.l.b16 %v437
        %v1047 = vunpack.c.l.b16 %v438
        %v1048 = vunpack.c.l.b16 %v439
        %v1049 = vunpack.c.l.b16 %v440
        %v1050 = vunpack.c.l.b16 %v441
        %v1051 = vunpack.c.l.b16 %v442
        %v1052 = vunpack.c.l.b16 %v443
        %v1053 = vunpack.c.l.b16 %v444
        %v1054 = vunpack.c.l.b16 %v445
        %v1055 = vunpack.c.l.b16 %v446
        %v1056 = vunpack.c.l.b16 %v447
        %v1057 = vunpack.c.l.b16 %v448
        %v1058 = vunpack.c.l.b16 %v449
        %v1059 = vunpack.c.l.b16 %v450
        %v1060 = vunpack.c.l.b16 %v451
        %v1061 = vunpack.c.l.b16 %v452
        %v1062 = vunpack.c.l.b16 %v453
        %v1063 = vunpack.c.l.b16 %v454
        %v1064 = vpack.c.b16 %v1033, %v1032
        %v1065 = vpack.c.b16 %v1035, %v1034
        %v1066 = vpack.c.b16 %v1037, %v1036
        %v1067 = vpack.c.b16 %v1039, %v1038
        %v1068 = vpack.c.b16 %v1041, %v1040
        %v1069 = vpack.c.b16 %v1043, %v1042
        %v1070 = vpack.c.b16 %v1045, %v1044
        %v1071 = vpack.c.b16 %v1047, %v1046
        %v1072 = vpack.c.b16 %v1049, %v1048
        %v1073 = vpack.c.b16 %v1051, %v1050
        %v1074 = vpack.c.b16 %v1053, %v1052
        %v1075 = vpack.c.b16 %v1055, %v1054
        %v1076 = vpack.c.b16 %v1057, %v1056
        %v1077 = vpack.c.b16 %v1059, %v1058
        %v1078 = vpack.c.b16 %v1061, %v1060
        %v1079 = vpack.c.b16 %v1063, %v1062
        %v1128 = vunpack.c.l.b16 %v487
        %v1129 = vunpack.c.l.b16 %v488
        %v1130 = vunpack.c.l.b16 %v489
        %v1131 = vunpack.c.l.b16 %v490
        %v1132 = vunpack.c.l.b16 %v491
        %v1133 = vunpack.c.l.b16 %v492
        %v1134 = vunpack.c.l.b16 %v493
        %v1135 = vunpack.c.l.b16 %v494
        %v1136 = vunpack.c.l.b16 %v495
        %v1137 = vunpack.c.l.b16 %v496
        %v1138 = vunpack.c.l.b16 %v497
        %v1139 = vunpack.c.l.b16 %v498
        %v1140 = vunpack.c.l.b16 %v499
        %v1141 = vunpack.c.l.b16 %v500
        %v1142 = vunpack.c.l.b16 %v501
        %v1143 = vunpack.c.l.b16 %v502
        %v1144 = vunpack.c.l.b16 %v503
        %v1145 = vunpack.c.l.b16 %v504
        %v1146 = vunpack.c.l.b16 %v505
        %v1147 = vunpack.c.l.b16 %v506
        %v1148 = vunpack.c.l.b16 %v507
        %v1149 = vunpack.c.l.b16 %v508
        %v1150 = vunpack.c.l.b16 %v509
        %v1151 = vunpack.c.l.b16 %v510
        %v1152 = vunpack.c.l.b16 %v511
        %v1153 = vunpack.c.l.b16 %v512
        %v1154 = vunpack.c.l.b16 %v513
        %v1155 = vunpack.c.l.b16 %v514
        %v1156 = vunpack.c.l.b16 %v515
        %v1157 = vunpack.c.l.b16 %v516
        %v1158 = vunpack.c.l.b16 %v517
        %v1159 = vunpack.c.l.b16 %v518
        %v1160 = vpack.c.b16 %v1129, %v1128
        %v1161 = vpack.c.b16 %v1131, %v1130
        %v1162 = vpack.c.b16 %v1133, %v1132
        %v1163 = vpack.c.b16 %v1135, %v1134
        %v1164 = vpack.c.b16 %v1137, %v1136
        %v1165 = vpack.c.b16 %v1139, %v1138
        %v1166 = vpack.c.b16 %v1141, %v1140
        %v1167 = vpack.c.b16 %v1143, %v1142
        %v1168 = vpack.c.b16 %v1145, %v1144
        %v1169 = vpack.c.b16 %v1147, %v1146
        %v1170 = vpack.c.b16 %v1149, %v1148
        %v1171 = vpack.c.b16 %v1151, %v1150
        %v1172 = vpack.c.b16 %v1153, %v1152
        %v1173 = vpack.c.b16 %v1155, %v1154
        %v1174 = vpack.c.b16 %v1157, %v1156
        %v1175 = vpack.c.b16 %v1159, %v1158
        %v1224 = vunpack.c.l.b16 %v551
        %v1225 = vunpack.c.l.b16 %v552
        %v1226 = vunpack.c.l.b16 %v553
        %v1227 = vunpack.c.l.b16 %v554
        %v1228 = vunpack.c.l.b16 %v555
        %v1229 = vunpack.c.l.b16 %v556
        %v1230 = vunpack.c.l.b16 %v557
        %v1231 = vunpack.c.l.b16 %v558
        %v1232 = vunpack.c.l.b16 %v559
        %v1233 = vunpack.c.l.b16 %v560
        %v1234 = vunpack.c.l.b16 %v561
        %v1235 = vunpack.c.l.b16 %v562
        %v1236 = vunpack.c.l.b16 %v563
        %v1237 = vunpack.c.l.b16 %v564
        %v1238 = vunpack.c.l.b16 %v565
        %v1239 = vunpack.c.l.b16 %v566
        %v1240 = vunpack.c.l.b16 %v567
        %v1241 = vunpack.c.l.b16 %v568
        %v1242 = vunpack.c.l.b16 %v569
        %v1243 = vunpack.c.l.b16 %v570
        %v1244 = vunpack.c.l.b16 %v571
        %v1245 = vunpack.c.l.b16 %v572
        %v1246 = vunpack.c.l.b16 %v573
        %v1247 = vunpack.c.l.b16 %v574
        %v1248 = vunpack.c.l.b16 %v575
        %v1249 = vunpack.c.l.b16 %v576
        %v1250 = vunpack.c.l.b16 %v577
        %v1251 = vunpack.c.l.b16 %v578
        %v1252 = vunpack.c.l.b16 %v579
        %v1253 = vunpack.c.l.b16 %v580
        %v1254 = vunpack.c.l.b16 %v581
        %v1255 = vunpack.c.l.b16 %v582
        %v1256 = vpack.c.b16 %v1225, %v1224
        %v1257 = vpack.c.b16 %v1227, %v1226
        %v1258 = vpack.c.b16 %v1229, %v1228
        %v1259 = vpack.c.b16 %v1231, %v1230
        %v1260 = vpack.c.b16 %v1233, %v1232
        %v1261 = vpack.c.b16 %v1235, %v1234
        %v1262 = vpack.c.b16 %v1237, %v1236
        %v1263 = vpack.c.b16 %v1239, %v1238
        %v1264 = vpack.c.b16 %v1241, %v1240
        %v1265 = vpack.c.b16 %v1243, %v1242
        %v1266 = vpack.c.b16 %v1245, %v1244
        %v1267 = vpack.c.b16 %v1247, %v1246
        %v1268 = vpack.c.b16 %v1249, %v1248
        %v1269 = vpack.c.b16 %v1251, %v1250
        %v1270 = vpack.c.b16 %v1253, %v1252
        %v1271 = vpack.c.b16 %v1255, %v1254
        %v1320 = vunpack.c.l.b16 %v615
        %v1321 = vunpack.c.l.b16 %v616
        %v1322 = vunpack.c.l.b16 %v617
        %v1323 = vunpack.c.l.b16 %v618
        %v1324 = vunpack.c.l.b16 %v619
        %v1325 = vunpack.c.l.b16 %v620
        %v1326 = vunpack.c.l.b16 %v621
        %v1327 = vunpack.c.l.b16 %v622
        %v1328 = vunpack.c.l.b16 %v623
        %v1329 = vunpack.c.l.b16 %v624
        %v1330 = vunpack.c.l.b16 %v625
        %v1331 = vunpack.c.l.b16 %v626
        %v1332 = vunpack.c.l.b16 %v627
        %v1333 = vunpack.c.l.b16 %v628
        %v1334 = vunpack.c.l.b16 %v629
        %v1335 = vunpack.c.l.b16 %v630
        %v1336 = vunpack.c.l.b16 %v631
        %v1337 = vunpack.c.l.b16 %v632
        %v1338 = vunpack.c.l.b16 %v633
        %v1339 = vunpack.c.l.b16 %v634
        %v1340 = vunpack.c.l.b16 %v635
        %v1341 = vunpack.c.l.b16 %v636
        %v1342 = vunpack.c.l.b16 %v637
        %v1343 = vunpack.c.l.b16 %v638
        %v1344 = vunpack.c.l.b16 %v639
        %v1345 = vunpack.c.l.b16 %v640
        %v1346 = vunpack.c.l.b16 %v641
        %v1347 = vunpack.c.l.b16 %v642
        %v1348 = vunpack.c.l.b16 %v643
        %v1349 = vunpack.c.l.b16 %v644
        %v1350 = vunpack.c.l.b16 %v645
        %v1351 = vunpack.c.l.b16 %v646
        %v1352 = vpack.c.b16 %v1321, %v1320
        %v1353 = vpack.c.b16 %v1323, %v1322
        %v1354 = vpack.c.b16 %v1325, %v1324
        %v1355 = vpack.c.b16 %v1327, %v1326
        %v1356 = vpack.c.b16 %v1329, %v1328
        %v1357 = vpack.c.b16 %v1331, %v1330
        %v1358 = vpack.c.b16 %v1333, %v1332
        %v1359 = vpack.c.b16 %v1335, %v1334
        %v1360 = vpack.c.b16 %v1337, %v1336
        %v1361 = vpack.c.b16 %v1339, %v1338
        %v1362 = vpack.c.b16 %v1341, %v1340
        %v1363 = vpack.c.b16 %v1343, %v1342
        %v1364 = vpack.c.b16 %v1345, %v1344
        %v1365 = vpack.c.b16 %v1347, %v1346
        %v1366 = vpack.c.b16 %v1349, %v1348
        %v1367 = vpack.c.b16 %v1351, %v1350
        %v1416 = vunpack.c.l.b16 %v679
        %v1417 = vunpack.c.l.b16 %v680
        %v1418 = vunpack.c.l.b16 %v681
        %v1419 = vunpack.c.l.b16 %v682
        %v1420 = vunpack.c.l.b16 %v683
        %v1421 = vunpack.c.l.b16 %v684
        %v1422 = vunpack.c.l.b16 %v685
        %v1423 = vunpack.c.l.b16 %v686
        %v1424 = vunpack.c.l.b16 %v687
        %v1425 = vunpack.c.l.b16 %v688
        %v1426 = vunpack.c.l.b16 %v689
        %v1427 = vunpack.c.l.b16 %v690
        %v1428 = vunpack.c.l.b16 %v691
        %v1429 = vunpack.c.l.b16 %v692
        %v1430 = vunpack.c.l.b16 %v693
        %v1431 = vunpack.c.l.b16 %v694
        %v1432 = vunpack.c.l.b16 %v695
        %v1433 = vunpack.c.l.b16 %v696
        %v1434 = vunpack.c.l.b16 %v697
        %v1435 = vunpack.c.l.b16 %v698
        %v1436 = vunpack.c.l.b16 %v699
        %v1437 = vunpack.c.l.b16 %v700
        %v1438 = vunpack.c.l.b16 %v701
        %v1439 = vunpack.c.l.b16 %v702
        %v1440 = vunpack.c.l.b16 %v703
        %v1441 = vunpack.c.l.b16 %v704
        %v1442 = vunpack.c.l.b16 %v705
        %v1443 = vunpack.c.l.b16 %v706
        %v1444 = vunpack.c.l.b16 %v707
        %v1445 = vunpack.c.l.b16 %v708
        %v1446 = vunpack.c.l.b16 %v709
        %v1447 = vunpack.c.l.b16 %v710
        %v1448 = vpack.c.b16 %v1417, %v1416
        %v1449 = vpack.c.b16 %v1419, %v1418
        %v1450 = vpack.c.b16 %v1421, %v1420
        %v1451 = vpack.c.b16 %v1423, %v1422
        %v1452 = vpack.c.b16 %v1425, %v1424
        %v1453 = vpack.c.b16 %v1427, %v1426
        %v1454 = vpack.c.b16 %v1429, %v1428
        %v1455 = vpack.c.b16 %v1431, %v1430
        %v1456 = vpack.c.b16 %v1433, %v1432
        %v1457 = vpack.c.b16 %v1435, %v1434
        %v1458 = vpack.c.b16 %v1437, %v1436
        %v1459 = vpack.c.b16 %v1439, %v1438
        %v1460 = vpack.c.b16 %v1441, %v1440
        %v1461 = vpack.c.b16 %v1443, %v1442
        %v1462 = vpack.c.b16 %v1445, %v1444
        %v1463 = vpack.c.b16 %v1447, %v1446
        %v1512 = vunpack.c.l.b16 %v744
        %v1513 = vunpack.c.l.b16 %v745
        %v1514 = vunpack.c.l.b16 %v746
        %v1515 = vunpack.c.l.b16 %v747
        %v1516 = vunpack.c.l.b16 %v748
        %v1517 = vunpack.c.l.b16 %v749
        %v1518 = vunpack.c.l.b16 %v750
        %v1519 = vunpack.c.l.b16 %v751
        %v1520 = vunpack.c.l.b16 %v752
        %v1521 = vunpack.c.l.b16 %v753
        %v1522 = vunpack.c.l.b16 %v754
        %v1523 = vunpack.c.l.b16 %v755
        %v1524 = vunpack.c.l.b16 %v756
        %v1525 = vunpack.c.l.b16 %v757
        %v1526 = vunpack.c.l.b16 %v758
        %v1527 = vunpack.c.l.b16 %v759
        %v1528 = vunpack.c.l.b16 %v760
        %v1529 = vunpack.c.l.b16 %v761
        %v1530 = vunpack.c.l.b16 %v762
        %v1531 = vunpack.c.l.b16 %v763
        %v1532 = vunpack.c.l.b16 %v764
        %v1533 = vunpack.c.l.b16 %v765
        %v1534 = vunpack.c.l.b16 %v766
        %v1535 = vunpack.c.l.b16 %v767
        %v1536 = vunpack.c.l.b16 %v768
        %v1537 = vunpack.c.l.b16 %v769
        %v1538 = vunpack.c.l.b16 %v770
        %v1539 = vunpack.c.l.b16 %v771
        %v1540 = vunpack.c.l.b16 %v772
        %v1541 = vunpack.c.l.b16 %v773
        %v1542 = vunpack.c.l.b16 %v774
        %v1543 = vunpack.c.l.b16 %v775
        %v1544 = vpack.c.b16 %v1513, %v1512
        %v1545 = vpack.c.b16 %v1515, %v1514
        %v1546 = vpack.c.b16 %v1517, %v1516
        %v1547 = vpack.c.b16 %v1519, %v1518
        %v1548 = vpack.c.b16 %v1521, %v1520
        %v1549 = vpack.c.b16 %v1523, %v1522
        %v1550 = vpack.c.b16 %v1525, %v1524
        %v1551 = vpack.c.b16 %v1527, %v1526
        %v1552 = vpack.c.b16 %v1529, %v1528
        %v1553 = vpack.c.b16 %v1531, %v1530
        %v1554 = vpack.c.b16 %v1533, %v1532
        %v1555 = vpack.c.b16 %v1535, %v1534
        %v1556 = vpack.c.b16 %v1537, %v1536
        %v1557 = vpack.c.b16 %v1539, %v1538
        %v1558 = vpack.c.b16 %v1541, %v1540
        %v1559 = vpack.c.b16 %v1543, %v1542
        %v1608 = vunpack.c.l.b16 %v808
        %v1609 = vunpack.c.l.b16 %v809
        %v1610 = vunpack.c.l.b16 %v810
        %v1611 = vunpack.c.l.b16 %v811
        %v1612 = vunpack.c.l.b16 %v812
        %v1613 = vunpack.c.l.b16 %v813
        %v1614 = vunpack.c.l.b16 %v814
        %v1615 = vunpack.c.l.b16 %v815
        %v1616 = vunpack.c.l.b16 %v816
        %v1617 = vunpack.c.l.b16 %v817
        %v1618 = vunpack.c.l.b16 %v818
        %v1619 = vunpack.c.l.b16 %v819
        %v1620 = vunpack.c.l.b16 %v820
        %v1621 = vunpack.c.l.b16 %v821
        %v1622 = vunpack.c.l.b16 %v822
        %v1623 = vunpack.c.l.b16 %v823
        %v1624 = vunpack.c.l.b16 %v824
        %v1625 = vunpack.c.l.b16 %v825
        %v1626 = vunpack.c.l.b16 %v826
        %v1627 = vunpack.c.l.b16 %v827
        %v1628 = vunpack.c.l.b16 %v828
        %v1629 = vunpack.c.l.b16 %v829
        %v1630 = vunpack.c.l.b16 %v830
        %v1631 = vunpack.c.l.b16 %v831
        %v1632 = vunpack.c.l.b16 %v832
        %v1633 = vunpack.c.l.b16 %v833
        %v1634 = vunpack.c.l.b16 %v834
        %v1635 = vunpack.c.l.b16 %v835
        %v1636 = vunpack.c.l.b16 %v836
        %v1637 = vunpack.c.l.b16 %v837
        %v1638 = vunpack.c.l.b16 %v838
        %v1639 = vunpack.c.l.b16 %v839
        %v1640 = vpack.c.b16 %v1609, %v1608
        %v1641 = vpack.c.b16 %v1611, %v1610
        %v1642 = vpack.c.b16 %v1613, %v1612
        %v1643 = vpack.c.b16 %v1615, %v1614
        %v1644 = vpack.c.b16 %v1617, %v1616
        %v1645 = vpack.c.b16 %v1619, %v1618
        %v1646 = vpack.c.b16 %v1621, %v1620
        %v1647 = vpack.c.b16 %v1623, %v1622
        %v1648 = vpack.c.b16 %v1625, %v1624
        %v1649 = vpack.c.b16 %v1627, %v1626
        %v1650 = vpack.c.b16 %v1629, %v1628
        %v1651 = vpack.c.b16 %v1631, %v1630
        %v1652 = vpack.c.b16 %v1633, %v1632
        %v1653 = vpack.c.b16 %v1635, %v1634
        %v1654 = vpack.c.b16 %v1637, %v1636
        %v1655 = vpack.c.b16 %v1639, %v1638
        %v1704 = vunpack.c.l.b16 %v872
        %v1705 = vunpack.c.l.b16 %v873
        %v1706 = vunpack.c.l.b16 %v874
        %v1707 = vunpack.c.l.b16 %v875
        %v1708 = vunpack.c.l.b16 %v876
        %v1709 = vunpack.c.l.b16 %v877
        %v1710 = vunpack.c.l.b16 %v878
        %v1711 = vunpack.c.l.b16 %v879
        %v1712 = vunpack.c.l.b16 %v880
        %v1713 = vunpack.c.l.b16 %v881
        %v1714 = vunpack.c.l.b16 %v882
        %v1715 = vunpack.c.l.b16 %v883
        %v1716 = vunpack.c.l.b16 %v884
        %v1717 = vunpack.c.l.b16 %v885
        %v1718 = vunpack.c.l.b16 %v886
        %v1719 = vunpack.c.l.b16 %v887
        %v1720 = vunpack.c.l.b16 %v888
        %v1721 = vunpack.c.l.b16 %v889
        %v1722 = vunpack.c.l.b16 %v890
        %v1723 = vunpack.c.l.b16 %v891
        %v1724 = vunpack.c.l.b16 %v892
        %v1725 = vunpack.c.l.b16 %v893
        %v1726 = vunpack.c.l.b16 %v894
        %v1727 = vunpack.c.l.b16 %v895
        %v1728 = vunpack.c.l.b16 %v896
        %v1729 = vunpack.c.l.b16 %v897
        %v1730 = vunpack.c.l.b16 %v898
        %v1731 = vunpack.c.l.b16 %v899
        %v1732 = vunpack.c.l.b16 %v900
        %v1733 = vunpack.c.l.b16 %v901
        %v1734 = vunpack.c.l.b16 %v902
        %v1735 = vunpack.c.l.b16 %v903
        %v1736 = vpack.c.b16 %v1705, %v1704
        %v1737 = vpack.c.b16 %v1707, %v1706
        %v1738 = vpack.c.b16 %v1709, %v1708
        %v1739 = vpack.c.b16 %v1711, %v1710
        %v1740 = vpack.c.b16 %v1713, %v1712
        %v1741 = vpack.c.b16 %v1715, %v1714
        %v1742 = vpack.c.b16 %v1717, %v1716
        %v1743 = vpack.c.b16 %v1719, %v1718
        %v1744 = vpack.c.b16 %v1721, %v1720
        %v1745 = vpack.c.b16 %v1723, %v1722
        %v1746 = vpack.c.b16 %v1725, %v1724
        %v1747 = vpack.c.b16 %v1727, %v1726
        %v1748 = vpack.c.b16 %v1729, %v1728
        %v1749 = vpack.c.b16 %v1731, %v1730
        %v1750 = vpack.c.b16 %v1733, %v1732
        %v1751 = vpack.c.b16 %v1735, %v1734
        %v1768 = vld [vmem:[#allocation6] sm:$0xf]
        %v1769 = vld [vmem:[#allocation6 + $0x4] sm:$0xf]
        %v1770 = vld [vmem:[#allocation6 + $0x8] sm:$0xf]
        %v1771 = vld [vmem:[#allocation6 + $0xc] sm:$0xf]
        %v1772 = vld [vmem:[#allocation6 + $0x10] sm:$0xf]
        %v1773 = vld [vmem:[#allocation6 + $0x14] sm:$0xf]
        %v1774 = vld [vmem:[#allocation6 + $0x18] sm:$0xf]
        %v1775 = vld [vmem:[#allocation6 + $0x1c] sm:$0xf]
        %v1776 = vld [vmem:[#allocation6 + $0x20] sm:$0xf]
        %v1777 = vld [vmem:[#allocation6 + $0x24] sm:$0xf]
        %v1778 = vld [vmem:[#allocation6 + $0x28] sm:$0xf]
        %v1779 = vld [vmem:[#allocation6 + $0x2c] sm:$0xf]
        %v1780 = vld [vmem:[#allocation6 + $0x30] sm:$0xf]
        %v1781 = vld [vmem:[#allocation6 + $0x34] sm:$0xf]
        %v1782 = vld [vmem:[#allocation6 + $0x38] sm:$0xf]
        %v1783 = vld [vmem:[#allocation6 + $0x3c] sm:$0xf]
        %v1784 = vld [vmem:[#allocation6 + $0x40] sm:$0xf]
        %v1785 = vld [vmem:[#allocation6 + $0x44] sm:$0xf]
        %v1786 = vld [vmem:[#allocation6 + $0x48] sm:$0xf]
        %v1787 = vld [vmem:[#allocation6 + $0x4c] sm:$0xf]
        %v1788 = vld [vmem:[#allocation6 + $0x50] sm:$0xf]
        %v1789 = vld [vmem:[#allocation6 + $0x54] sm:$0xf]
        %v1790 = vld [vmem:[#allocation6 + $0x58] sm:$0xf]
        %v1791 = vld [vmem:[#allocation6 + $0x5c] sm:$0xf]
        %v1792 = vld [vmem:[#allocation6 + $0x60] sm:$0xf]
        %v1793 = vld [vmem:[#allocation6 + $0x64] sm:$0xf]
        %v1794 = vld [vmem:[#allocation6 + $0x68] sm:$0xf]
        %v1795 = vld [vmem:[#allocation6 + $0x6c] sm:$0xf]
        %v1796 = vld [vmem:[#allocation6 + $0x70] sm:$0xf]
        %v1797 = vld [vmem:[#allocation6 + $0x74] sm:$0xf]
        %v1798 = vld [vmem:[#allocation6 + $0x78] sm:$0xf]
        %v1799 = vld [vmem:[#allocation6 + $0x7c] sm:$0xf]
        %v1800 = vld [vmem:[#allocation6 + $0x80] sm:$0xf]
        %v1801 = vld [vmem:[#allocation6 + $0x84] sm:$0xf]
        %v1802 = vld [vmem:[#allocation6 + $0x88] sm:$0xf]
        %v1803 = vld [vmem:[#allocation6 + $0x8c] sm:$0xf]
        %v1804 = vld [vmem:[#allocation6 + $0x90] sm:$0xf]
        %v1805 = vld [vmem:[#allocation6 + $0x94] sm:$0xf]
        %v1806 = vld [vmem:[#allocation6 + $0x98] sm:$0xf]
        %v1807 = vld [vmem:[#allocation6 + $0x9c] sm:$0xf]
        %v1808 = vld [vmem:[#allocation6 + $0xa0] sm:$0xf]
        %v1809 = vld [vmem:[#allocation6 + $0xa4] sm:$0xf]
        %v1810 = vld [vmem:[#allocation6 + $0xa8] sm:$0xf]
        %v1811 = vld [vmem:[#allocation6 + $0xac] sm:$0xf]
        %v1812 = vld [vmem:[#allocation6 + $0xb0] sm:$0xf]
        %v1813 = vld [vmem:[#allocation6 + $0xb4] sm:$0xf]
        %v1814 = vld [vmem:[#allocation6 + $0xb8] sm:$0xf]
        %v1815 = vld [vmem:[#allocation6 + $0xbc] sm:$0xf]
        %v1816 = vld [vmem:[#allocation6 + $0xc0] sm:$0xf]
        %v1817 = vld [vmem:[#allocation6 + $0xc4] sm:$0xf]
        %v1818 = vld [vmem:[#allocation6 + $0xc8] sm:$0xf]
        %v1819 = vld [vmem:[#allocation6 + $0xcc] sm:$0xf]
        %v1820 = vld [vmem:[#allocation6 + $0xd0] sm:$0xf]
        %v1821 = vld [vmem:[#allocation6 + $0xd4] sm:$0xf]
        %v1822 = vld [vmem:[#allocation6 + $0xd8] sm:$0xf]
        %v1823 = vld [vmem:[#allocation6 + $0xdc] sm:$0xf]
        %v1824 = vld [vmem:[#allocation6 + $0xe0] sm:$0xf]
        %v1825 = vld [vmem:[#allocation6 + $0xe4] sm:$0xf]
        %v1826 = vld [vmem:[#allocation6 + $0xe8] sm:$0xf]
        %v1827 = vld [vmem:[#allocation6 + $0xec] sm:$0xf]
        %v1828 = vld [vmem:[#allocation6 + $0xf0] sm:$0xf]
        %v1829 = vld [vmem:[#allocation6 + $0xf4] sm:$0xf]
        %v1830 = vld [vmem:[#allocation6 + $0xf8] sm:$0xf]
        %v1831 = vld [vmem:[#allocation6 + $0xfc] sm:$0xf]
        %v1832 = vld [vmem:[#allocation6 + $0x100] sm:$0xf]
        %v1833 = vld [vmem:[#allocation6 + $0x104] sm:$0xf]
        %v1834 = vld [vmem:[#allocation6 + $0x108] sm:$0xf]
        %v1835 = vld [vmem:[#allocation6 + $0x10c] sm:$0xf]
        %v1836 = vld [vmem:[#allocation6 + $0x110] sm:$0xf]
        %v1837 = vld [vmem:[#allocation6 + $0x114] sm:$0xf]
        %v1838 = vld [vmem:[#allocation6 + $0x118] sm:$0xf]
        %v1839 = vld [vmem:[#allocation6 + $0x11c] sm:$0xf]
        %v1840 = vld [vmem:[#allocation6 + $0x120] sm:$0xf]
        %v1841 = vld [vmem:[#allocation6 + $0x124] sm:$0xf]
        %v1842 = vld [vmem:[#allocation6 + $0x128] sm:$0xf]
        %v1843 = vld [vmem:[#allocation6 + $0x12c] sm:$0xf]
        %v1844 = vld [vmem:[#allocation6 + $0x130] sm:$0xf]
        %v1845 = vld [vmem:[#allocation6 + $0x134] sm:$0xf]
        %v1846 = vld [vmem:[#allocation6 + $0x138] sm:$0xf]
        %v1847 = vld [vmem:[#allocation6 + $0x13c] sm:$0xf]
        %v1848 = vld [vmem:[#allocation6 + $0x140] sm:$0xf]
        %v1849 = vld [vmem:[#allocation6 + $0x144] sm:$0xf]
        %v1850 = vld [vmem:[#allocation6 + $0x148] sm:$0xf]
        %v1851 = vld [vmem:[#allocation6 + $0x14c] sm:$0xf]
        %v1852 = vld [vmem:[#allocation6 + $0x150] sm:$0xf]
        %v1853 = vld [vmem:[#allocation6 + $0x154] sm:$0xf]
        %v1854 = vld [vmem:[#allocation6 + $0x158] sm:$0xf]
        %v1855 = vld [vmem:[#allocation6 + $0x15c] sm:$0xf]
        %v1856 = vld [vmem:[#allocation6 + $0x160] sm:$0xf]
        %v1857 = vld [vmem:[#allocation6 + $0x164] sm:$0xf]
        %v1858 = vld [vmem:[#allocation6 + $0x168] sm:$0xf]
        %v1859 = vld [vmem:[#allocation6 + $0x16c] sm:$0xf]
        %v1860 = vld [vmem:[#allocation6 + $0x170] sm:$0xf]
        %v1861 = vld [vmem:[#allocation6 + $0x174] sm:$0xf]
        %v1862 = vld [vmem:[#allocation6 + $0x178] sm:$0xf]
        %v1863 = vld [vmem:[#allocation6 + $0x17c] sm:$0xf]
        %v1864 = vld [vmem:[#allocation6 + $0x180] sm:$0xf]
        %v1865 = vld [vmem:[#allocation6 + $0x184] sm:$0xf]
        %v1866 = vld [vmem:[#allocation6 + $0x188] sm:$0xf]
        %v1867 = vld [vmem:[#allocation6 + $0x18c] sm:$0xf]
        %v1868 = vld [vmem:[#allocation6 + $0x190] sm:$0xf]
        %v1869 = vld [vmem:[#allocation6 + $0x194] sm:$0xf]
        %v1870 = vld [vmem:[#allocation6 + $0x198] sm:$0xf]
        %v1871 = vld [vmem:[#allocation6 + $0x19c] sm:$0xf]
        %v1872 = vld [vmem:[#allocation6 + $0x1a0] sm:$0xf]
        %v1873 = vld [vmem:[#allocation6 + $0x1a4] sm:$0xf]
        %v1874 = vld [vmem:[#allocation6 + $0x1a8] sm:$0xf]
        %v1875 = vld [vmem:[#allocation6 + $0x1ac] sm:$0xf]
        %v1876 = vld [vmem:[#allocation6 + $0x1b0] sm:$0xf]
        %v1877 = vld [vmem:[#allocation6 + $0x1b4] sm:$0xf]
        %v1878 = vld [vmem:[#allocation6 + $0x1b8] sm:$0xf]
        %v1879 = vld [vmem:[#allocation6 + $0x1bc] sm:$0xf]
        %v1880 = vld [vmem:[#allocation6 + $0x1c0] sm:$0xf]
        %v1881 = vld [vmem:[#allocation6 + $0x1c4] sm:$0xf]
        %v1882 = vld [vmem:[#allocation6 + $0x1c8] sm:$0xf]
        %v1883 = vld [vmem:[#allocation6 + $0x1cc] sm:$0xf]
        %v1884 = vld [vmem:[#allocation6 + $0x1d0] sm:$0xf]
        %v1885 = vld [vmem:[#allocation6 + $0x1d4] sm:$0xf]
        %v1886 = vld [vmem:[#allocation6 + $0x1d8] sm:$0xf]
        %v1887 = vld [vmem:[#allocation6 + $0x1dc] sm:$0xf]
        %v1888 = vld [vmem:[#allocation6 + $0x1e0] sm:$0xf]
        %v1889 = vld [vmem:[#allocation6 + $0x1e4] sm:$0xf]
        %v1890 = vld [vmem:[#allocation6 + $0x1e8] sm:$0xf]
        %v1891 = vld [vmem:[#allocation6 + $0x1ec] sm:$0xf]
        %v1892 = vld [vmem:[#allocation6 + $0x1f0] sm:$0xf]
        %v1893 = vld [vmem:[#allocation6 + $0x1f4] sm:$0xf]
        %v1894 = vld [vmem:[#allocation6 + $0x1f8] sm:$0xf]
        %v1895 = vld [vmem:[#allocation6 + $0x1fc] sm:$0xf]
        %v1896 = vld [vmem:[#allocation6 + $0x200] sm:$0xf]
        %v1897 = vld [vmem:[#allocation6 + $0x204] sm:$0xf]
        %v1898 = vld [vmem:[#allocation6 + $0x208] sm:$0xf]
        %v1899 = vld [vmem:[#allocation6 + $0x20c] sm:$0xf]
        %v1900 = vld [vmem:[#allocation6 + $0x210] sm:$0xf]
        %v1901 = vld [vmem:[#allocation6 + $0x214] sm:$0xf]
        %v1902 = vld [vmem:[#allocation6 + $0x218] sm:$0xf]
        %v1903 = vld [vmem:[#allocation6 + $0x21c] sm:$0xf]
        %v1904 = vld [vmem:[#allocation6 + $0x220] sm:$0xf]
        %v1905 = vld [vmem:[#allocation6 + $0x224] sm:$0xf]
        %v1906 = vld [vmem:[#allocation6 + $0x228] sm:$0xf]
        %v1907 = vld [vmem:[#allocation6 + $0x22c] sm:$0xf]
        %v1908 = vld [vmem:[#allocation6 + $0x230] sm:$0xf]
        %v1909 = vld [vmem:[#allocation6 + $0x234] sm:$0xf]
        %v1910 = vld [vmem:[#allocation6 + $0x238] sm:$0xf]
        %v1911 = vld [vmem:[#allocation6 + $0x23c] sm:$0xf]
        %v1912 = vld [vmem:[%s2] sm:$0x1]
        %v1914 = vperm.slane %v1912, 0
        %v2060 = vunpack.c.l.b16 %v1768
        %v2061 = vunpack.c.l.b16 %v1769
        %v2062 = vunpack.c.l.b16 %v1770
        %v2063 = vunpack.c.l.b16 %v1771
        %v2064 = vunpack.c.l.b16 %v1772
        %v2065 = vunpack.c.l.b16 %v1773
        %v2066 = vunpack.c.l.b16 %v1774
        %v2067 = vunpack.c.l.b16 %v1775
        %v2068 = vunpack.c.l.b16 %v1776
        %v2069 = vunpack.c.l.b16 %v1777
        %v2070 = vunpack.c.l.b16 %v1778
        %v2071 = vunpack.c.l.b16 %v1779
        %v2072 = vunpack.c.l.b16 %v1780
        %v2073 = vunpack.c.l.b16 %v1781
        %v2074 = vunpack.c.l.b16 %v1782
        %v2075 = vunpack.c.l.b16 %v1783
        %v2076 = vunpack.c.l.b16 %v1784
        %v2077 = vunpack.c.l.b16 %v1785
        %v2078 = vunpack.c.l.b16 %v1786
        %v2079 = vunpack.c.l.b16 %v1787
        %v2080 = vunpack.c.l.b16 %v1788
        %v2081 = vunpack.c.l.b16 %v1789
        %v2082 = vunpack.c.l.b16 %v1790
        %v2083 = vunpack.c.l.b16 %v1791
        %v2084 = vunpack.c.l.b16 %v1792
        %v2085 = vunpack.c.l.b16 %v1793
        %v2086 = vunpack.c.l.b16 %v1794
        %v2087 = vunpack.c.l.b16 %v1795
        %v2088 = vunpack.c.l.b16 %v1796
        %v2089 = vunpack.c.l.b16 %v1797
        %v2090 = vunpack.c.l.b16 %v1798
        %v2091 = vunpack.c.l.b16 %v1799
        %v2092 = vunpack.c.l.b16 %v1800
        %v2093 = vunpack.c.l.b16 %v1801
        %v2094 = vunpack.c.l.b16 %v1802
        %v2095 = vunpack.c.l.b16 %v1803
        %v2096 = vunpack.c.l.b16 %v1804
        %v2097 = vunpack.c.l.b16 %v1805
        %v2098 = vunpack.c.l.b16 %v1806
        %v2099 = vunpack.c.l.b16 %v1807
        %v2100 = vunpack.c.l.b16 %v1808
        %v2101 = vunpack.c.l.b16 %v1809
        %v2102 = vunpack.c.l.b16 %v1810
        %v2103 = vunpack.c.l.b16 %v1811
        %v2104 = vunpack.c.l.b16 %v1812
        %v2105 = vunpack.c.l.b16 %v1813
        %v2106 = vunpack.c.l.b16 %v1814
        %v2107 = vunpack.c.l.b16 %v1815
        %v2108 = vunpack.c.l.b16 %v1816
        %v2109 = vunpack.c.l.b16 %v1817
        %v2110 = vunpack.c.l.b16 %v1818
        %v2111 = vunpack.c.l.b16 %v1819
        %v2112 = vunpack.c.l.b16 %v1820
        %v2113 = vunpack.c.l.b16 %v1821
        %v2114 = vunpack.c.l.b16 %v1822
        %v2115 = vunpack.c.l.b16 %v1823
        %v2116 = vunpack.c.l.b16 %v1824
        %v2117 = vunpack.c.l.b16 %v1825
        %v2118 = vunpack.c.l.b16 %v1826
        %v2119 = vunpack.c.l.b16 %v1827
        %v2120 = vunpack.c.l.b16 %v1828
        %v2121 = vunpack.c.l.b16 %v1829
        %v2122 = vunpack.c.l.b16 %v1830
        %v2123 = vunpack.c.l.b16 %v1831
        %v2124 = vunpack.c.l.b16 %v1832
        %v2125 = vunpack.c.l.b16 %v1833
        %v2126 = vunpack.c.l.b16 %v1834
        %v2127 = vunpack.c.l.b16 %v1835
        %v2128 = vunpack.c.l.b16 %v1836
        %v2129 = vunpack.c.l.b16 %v1837
        %v2130 = vunpack.c.l.b16 %v1838
        %v2131 = vunpack.c.l.b16 %v1839
        %v2132 = vunpack.c.l.b16 %v1840
        %v2133 = vunpack.c.l.b16 %v1841
        %v2134 = vunpack.c.l.b16 %v1842
        %v2135 = vunpack.c.l.b16 %v1843
        %v2136 = vunpack.c.l.b16 %v1844
        %v2137 = vunpack.c.l.b16 %v1845
        %v2138 = vunpack.c.l.b16 %v1846
        %v2139 = vunpack.c.l.b16 %v1847
        %v2140 = vunpack.c.l.b16 %v1848
        %v2141 = vunpack.c.l.b16 %v1849
        %v2142 = vunpack.c.l.b16 %v1850
        %v2143 = vunpack.c.l.b16 %v1851
        %v2144 = vunpack.c.l.b16 %v1852
        %v2145 = vunpack.c.l.b16 %v1853
        %v2146 = vunpack.c.l.b16 %v1854
        %v2147 = vunpack.c.l.b16 %v1855
        %v2148 = vunpack.c.l.b16 %v1856
        %v2149 = vunpack.c.l.b16 %v1857
        %v2150 = vunpack.c.l.b16 %v1858
        %v2151 = vunpack.c.l.b16 %v1859
        %v2152 = vunpack.c.l.b16 %v1860
        %v2153 = vunpack.c.l.b16 %v1861
        %v2154 = vunpack.c.l.b16 %v1862
        %v2155 = vunpack.c.l.b16 %v1863
        %v2156 = vunpack.c.l.b16 %v1864
        %v2157 = vunpack.c.l.b16 %v1865
        %v2158 = vunpack.c.l.b16 %v1866
        %v2159 = vunpack.c.l.b16 %v1867
        %v2160 = vunpack.c.l.b16 %v1868
        %v2161 = vunpack.c.l.b16 %v1869
        %v2162 = vunpack.c.l.b16 %v1870
        %v2163 = vunpack.c.l.b16 %v1871
        %v2164 = vunpack.c.l.b16 %v1872
        %v2165 = vunpack.c.l.b16 %v1873
        %v2166 = vunpack.c.l.b16 %v1874
        %v2167 = vunpack.c.l.b16 %v1875
        %v2168 = vunpack.c.l.b16 %v1876
        %v2169 = vunpack.c.l.b16 %v1877
        %v2170 = vunpack.c.l.b16 %v1878
        %v2171 = vunpack.c.l.b16 %v1879
        %v2172 = vunpack.c.l.b16 %v1880
        %v2173 = vunpack.c.l.b16 %v1881
        %v2174 = vunpack.c.l.b16 %v1882
        %v2175 = vunpack.c.l.b16 %v1883
        %v2176 = vunpack.c.l.b16 %v1884
        %v2177 = vunpack.c.l.b16 %v1885
        %v2178 = vunpack.c.l.b16 %v1886
        %v2179 = vunpack.c.l.b16 %v1887
        %v2180 = vunpack.c.l.b16 %v1888
        %v2181 = vunpack.c.l.b16 %v1889
        %v2182 = vunpack.c.l.b16 %v1890
        %v2183 = vunpack.c.l.b16 %v1891
        %v2184 = vunpack.c.l.b16 %v1892
        %v2185 = vunpack.c.l.b16 %v1893
        %v2186 = vunpack.c.l.b16 %v1894
        %v2187 = vunpack.c.l.b16 %v1895
        %v2188 = vunpack.c.l.b16 %v1896
        %v2189 = vunpack.c.l.b16 %v1897
        %v2190 = vunpack.c.l.b16 %v1898
        %v2191 = vunpack.c.l.b16 %v1899
        %v2192 = vunpack.c.l.b16 %v1900
        %v2193 = vunpack.c.l.b16 %v1901
        %v2194 = vunpack.c.l.b16 %v1902
        %v2195 = vunpack.c.l.b16 %v1903
        %v2196 = vunpack.c.l.b16 %v1904
        %v2197 = vunpack.c.l.b16 %v1905
        %v2198 = vunpack.c.l.b16 %v1906
        %v2199 = vunpack.c.l.b16 %v1907
        %v2200 = vunpack.c.l.b16 %v1908
        %v2201 = vunpack.c.l.b16 %v1909
        %v2202 = vunpack.c.l.b16 %v1910
        %v2203 = vunpack.c.l.b16 %v1911
        %v2204 = vpack.c.b16 %v2061, %v2060
        %v2205 = vpack.c.b16 %v2063, %v2062
        %v2206 = vpack.c.b16 %v2065, %v2064
        %v2207 = vpack.c.b16 %v2067, %v2066
        %v2208 = vpack.c.b16 %v2069, %v2068
        %v2209 = vpack.c.b16 %v2071, %v2070
        %v2210 = vpack.c.b16 %v2073, %v2072
        %v2211 = vpack.c.b16 %v2075, %v2074
        %v2212 = vpack.c.b16 %v2077, %v2076
        %v2213 = vpack.c.b16 %v2079, %v2078
        %v2214 = vpack.c.b16 %v2081, %v2080
        %v2215 = vpack.c.b16 %v2083, %v2082
        %v2216 = vpack.c.b16 %v2085, %v2084
        %v2217 = vpack.c.b16 %v2087, %v2086
        %v2218 = vpack.c.b16 %v2089, %v2088
        %v2219 = vpack.c.b16 %v2091, %v2090
        %v2220 = vpack.c.b16 %v2093, %v2092
        %v2221 = vpack.c.b16 %v2095, %v2094
        %v2222 = vpack.c.b16 %v2097, %v2096
        %v2223 = vpack.c.b16 %v2099, %v2098
        %v2224 = vpack.c.b16 %v2101, %v2100
        %v2225 = vpack.c.b16 %v2103, %v2102
        %v2226 = vpack.c.b16 %v2105, %v2104
        %v2227 = vpack.c.b16 %v2107, %v2106
        %v2228 = vpack.c.b16 %v2109, %v2108
        %v2229 = vpack.c.b16 %v2111, %v2110
        %v2230 = vpack.c.b16 %v2113, %v2112
        %v2231 = vpack.c.b16 %v2115, %v2114
        %v2232 = vpack.c.b16 %v2117, %v2116
        %v2233 = vpack.c.b16 %v2119, %v2118
        %v2234 = vpack.c.b16 %v2121, %v2120
        %v2235 = vpack.c.b16 %v2123, %v2122
        %v2236 = vpack.c.b16 %v2125, %v2124
        %v2237 = vpack.c.b16 %v2127, %v2126
        %v2238 = vpack.c.b16 %v2129, %v2128
        %v2239 = vpack.c.b16 %v2131, %v2130
        %v2240 = vpack.c.b16 %v2133, %v2132
        %v2241 = vpack.c.b16 %v2135, %v2134
        %v2242 = vpack.c.b16 %v2137, %v2136
        %v2243 = vpack.c.b16 %v2139, %v2138
        %v2244 = vpack.c.b16 %v2141, %v2140
        %v2245 = vpack.c.b16 %v2143, %v2142
        %v2246 = vpack.c.b16 %v2145, %v2144
        %v2247 = vpack.c.b16 %v2147, %v2146
        %v2248 = vpack.c.b16 %v2149, %v2148
        %v2249 = vpack.c.b16 %v2151, %v2150
        %v2250 = vpack.c.b16 %v2153, %v2152
        %v2251 = vpack.c.b16 %v2155, %v2154
        %v2252 = vpack.c.b16 %v2157, %v2156
        %v2253 = vpack.c.b16 %v2159, %v2158
        %v2254 = vpack.c.b16 %v2161, %v2160
        %v2255 = vpack.c.b16 %v2163, %v2162
        %v2256 = vpack.c.b16 %v2165, %v2164
        %v2257 = vpack.c.b16 %v2167, %v2166
        %v2258 = vpack.c.b16 %v2169, %v2168
        %v2259 = vpack.c.b16 %v2171, %v2170
        %v2260 = vpack.c.b16 %v2173, %v2172
        %v2261 = vpack.c.b16 %v2175, %v2174
        %v2262 = vpack.c.b16 %v2177, %v2176
        %v2263 = vpack.c.b16 %v2179, %v2178
        %v2264 = vpack.c.b16 %v2181, %v2180
        %v2265 = vpack.c.b16 %v2183, %v2182
        %v2266 = vpack.c.b16 %v2185, %v2184
        %v2267 = vpack.c.b16 %v2187, %v2186
        %v2268 = vpack.c.b16 %v2189, %v2188
        %v2269 = vpack.c.b16 %v2191, %v2190
        %v2270 = vpack.c.b16 %v2193, %v2192
        %v2271 = vpack.c.b16 %v2195, %v2194
        %v2272 = vpack.c.b16 %v2197, %v2196
        %v2273 = vpack.c.b16 %v2199, %v2198
        %v2274 = vpack.c.b16 %v2201, %v2200
        %v2275 = vpack.c.b16 %v2203, %v2202
        %2348 = vmatpush.bf16.msra.mxu0 %v2211
        %2349 = vmatpush.bf16.msra.mxu0 %v2210
        %2350 = vmatpush.bf16.msra.mxu0 %v2209
        %2351 = vmatpush.bf16.msra.mxu0 %v2208
        %2352 = vmatpush.bf16.msra.mxu0 %v2207
        %2353 = vmatpush.bf16.msra.mxu0 %v2206
        %2354 = vmatpush.bf16.msra.mxu0 %v2205
        %2355 = vmatpush.bf16.msra.mxu0 %v2204
        %2356 = vmatmul.bf16.gmra.mxu0 %v968
        %v2357 = vpop.f32.mrf.mxu0
        %v2358 = vadd.f32 %v1914, %v2357
        %v2359 = vpop.f32.mrf.mxu0
        %v2360 = vadd.f32 %v1914, %v2359
        %2361 = vmatmul.bf16.gmra.mxu0 %v969
        %v2362 = vpop.f32.mrf.mxu0
        %v2363 = vadd.f32 %v1914, %v2362
        %v2364 = vpop.f32.mrf.mxu0
        %v2365 = vadd.f32 %v1914, %v2364
        %2366 = vmatmul.bf16.gmra.mxu0 %v970
        %v2367 = vpop.f32.mrf.mxu0
        %v2368 = vadd.f32 %v1914, %v2367
        %v2369 = vpop.f32.mrf.mxu0
        %v2370 = vadd.f32 %v1914, %v2369
        %2371 = vmatmul.bf16.gmra.mxu0 %v971
        %v2372 = vpop.f32.mrf.mxu0
        %v2373 = vadd.f32 %v1914, %v2372
        %v2374 = vpop.f32.mrf.mxu0
        %v2375 = vadd.f32 %v1914, %v2374
        %2376 = vmatmul.bf16.gmra.mxu0 %v972
        %v2377 = vpop.f32.mrf.mxu0
        %v2378 = vadd.f32 %v1914, %v2377
        %v2379 = vpop.f32.mrf.mxu0
        %v2380 = vadd.f32 %v1914, %v2379
        %2381 = vmatmul.bf16.gmra.mxu0 %v973
        %v2382 = vpop.f32.mrf.mxu0
        %v2383 = vadd.f32 %v1914, %v2382
        %v2384 = vpop.f32.mrf.mxu0
        %v2385 = vadd.f32 %v1914, %v2384
        %2386 = vmatmul.bf16.gmra.mxu0 %v974
        %v2387 = vpop.f32.mrf.mxu0
        %v2388 = vadd.f32 %v1914, %v2387
        %v2389 = vpop.f32.mrf.mxu0
        %v2390 = vadd.f32 %v1914, %v2389
        %2391 = vmatmul.bf16.gmra.mxu0 %v975
        %v2392 = vpop.f32.mrf.mxu0
        %v2393 = vadd.f32 %v1914, %v2392
        %v2394 = vpop.f32.mrf.mxu0
        %v2395 = vadd.f32 %v1914, %v2394
        %2396 = vmatmul.bf16.gmra.mxu0 %v976
        %v2397 = vpop.f32.mrf.mxu0
        %v2398 = vadd.f32 %v1914, %v2397
        %v2399 = vpop.f32.mrf.mxu0
        %v2400 = vadd.f32 %v1914, %v2399
        %2401 = vmatmul.bf16.gmra.mxu0 %v977
        %v2402 = vpop.f32.mrf.mxu0
        %v2403 = vadd.f32 %v1914, %v2402
        %v2404 = vpop.f32.mrf.mxu0
        %v2405 = vadd.f32 %v1914, %v2404
        %2406 = vmatmul.bf16.gmra.mxu0 %v978
        %v2407 = vpop.f32.mrf.mxu0
        %v2408 = vadd.f32 %v1914, %v2407
        %v2409 = vpop.f32.mrf.mxu0
        %v2410 = vadd.f32 %v1914, %v2409
        %2411 = vmatmul.bf16.gmra.mxu0 %v979
        %v2412 = vpop.f32.mrf.mxu0
        %v2413 = vadd.f32 %v1914, %v2412
        %v2414 = vpop.f32.mrf.mxu0
        %v2415 = vadd.f32 %v1914, %v2414
        %2416 = vmatmul.bf16.gmra.mxu0 %v980
        %v2417 = vpop.f32.mrf.mxu0
        %v2418 = vadd.f32 %v1914, %v2417
        %v2419 = vpop.f32.mrf.mxu0
        %v2420 = vadd.f32 %v1914, %v2419
        %2421 = vmatmul.bf16.gmra.mxu0 %v981
        %v2422 = vpop.f32.mrf.mxu0
        %v2423 = vadd.f32 %v1914, %v2422
        %v2424 = vpop.f32.mrf.mxu0
        %v2425 = vadd.f32 %v1914, %v2424
        %2426 = vmatmul.bf16.gmra.mxu0 %v982
        %v2427 = vpop.f32.mrf.mxu0
        %v2428 = vadd.f32 %v1914, %v2427
        %v2429 = vpop.f32.mrf.mxu0
        %v2430 = vadd.f32 %v1914, %v2429
        %2431 = vmatmul.bf16.gmra.mxu0 %v983
        %v2432 = vpop.f32.mrf.mxu0
        %v2433 = vadd.f32 %v1914, %v2432
        %v2434 = vpop.f32.mrf.mxu0
        %v2435 = vadd.f32 %v1914, %v2434
        %2436 = vdwg.mxu0
        %2437 = vmatpush.bf16.msra.mxu0 %v2219
        %2438 = vmatpush.bf16.msra.mxu0 %v2218
        %2439 = vmatpush.bf16.msra.mxu0 %v2217
        %2440 = vmatpush.bf16.msra.mxu0 %v2216
        %2441 = vmatpush.bf16.msra.mxu0 %v2215
        %2442 = vmatpush.bf16.msra.mxu0 %v2214
        %2443 = vmatpush.bf16.msra.mxu0 %v2213
        %2444 = vmatpush.bf16.msra.mxu0 %v2212
        %2445 = vmatmul.bf16.gmra.mxu0 %v1064
        %v2446 = vpop.f32.mrf.mxu0
        %v2447 = vadd.f32 %v2358, %v2446
        %v2448 = vpop.f32.mrf.mxu0
        %v2449 = vadd.f32 %v2360, %v2448
        %2450 = vmatmul.bf16.gmra.mxu0 %v1065
        %v2451 = vpop.f32.mrf.mxu0
        %v2452 = vadd.f32 %v2363, %v2451
        %v2453 = vpop.f32.mrf.mxu0
        %v2454 = vadd.f32 %v2365, %v2453
        %2455 = vmatmul.bf16.gmra.mxu0 %v1066
        %v2456 = vpop.f32.mrf.mxu0
        %v2457 = vadd.f32 %v2368, %v2456
        %v2458 = vpop.f32.mrf.mxu0
        %v2459 = vadd.f32 %v2370, %v2458
        %2460 = vmatmul.bf16.gmra.mxu0 %v1067
        %v2461 = vpop.f32.mrf.mxu0
        %v2462 = vadd.f32 %v2373, %v2461
        %v2463 = vpop.f32.mrf.mxu0
        %v2464 = vadd.f32 %v2375, %v2463
        %2465 = vmatmul.bf16.gmra.mxu0 %v1068
        %v2466 = vpop.f32.mrf.mxu0
        %v2467 = vadd.f32 %v2378, %v2466
        %v2468 = vpop.f32.mrf.mxu0
        %v2469 = vadd.f32 %v2380, %v2468
        %2470 = vmatmul.bf16.gmra.mxu0 %v1069
        %v2471 = vpop.f32.mrf.mxu0
        %v2472 = vadd.f32 %v2383, %v2471
        %v2473 = vpop.f32.mrf.mxu0
        %v2474 = vadd.f32 %v2385, %v2473
        %2475 = vmatmul.bf16.gmra.mxu0 %v1070
        %v2476 = vpop.f32.mrf.mxu0
        %v2477 = vadd.f32 %v2388, %v2476
        %v2478 = vpop.f32.mrf.mxu0
        %v2479 = vadd.f32 %v2390, %v2478
        %2480 = vmatmul.bf16.gmra.mxu0 %v1071
        %v2481 = vpop.f32.mrf.mxu0
        %v2482 = vadd.f32 %v2393, %v2481
        %v2483 = vpop.f32.mrf.mxu0
        %v2484 = vadd.f32 %v2395, %v2483
        %2485 = vmatmul.bf16.gmra.mxu0 %v1072
        %v2486 = vpop.f32.mrf.mxu0
        %v2487 = vadd.f32 %v2398, %v2486
        %v2488 = vpop.f32.mrf.mxu0
        %v2489 = vadd.f32 %v2400, %v2488
        %2490 = vmatmul.bf16.gmra.mxu0 %v1073
        %v2491 = vpop.f32.mrf.mxu0
        %v2492 = vadd.f32 %v2403, %v2491
        %v2493 = vpop.f32.mrf.mxu0
        %v2494 = vadd.f32 %v2405, %v2493
        %2495 = vmatmul.bf16.gmra.mxu0 %v1074
        %v2496 = vpop.f32.mrf.mxu0
        %v2497 = vadd.f32 %v2408, %v2496
        %v2498 = vpop.f32.mrf.mxu0
        %v2499 = vadd.f32 %v2410, %v2498
        %2500 = vmatmul.bf16.gmra.mxu0 %v1075
        %v2501 = vpop.f32.mrf.mxu0
        %v2502 = vadd.f32 %v2413, %v2501
        %v2503 = vpop.f32.mrf.mxu0
        %v2504 = vadd.f32 %v2415, %v2503
        %2505 = vmatmul.bf16.gmra.mxu0 %v1076
        %v2506 = vpop.f32.mrf.mxu0
        %v2507 = vadd.f32 %v2418, %v2506
        %v2508 = vpop.f32.mrf.mxu0
        %v2509 = vadd.f32 %v2420, %v2508
        %2510 = vmatmul.bf16.gmra.mxu0 %v1077
        %v2511 = vpop.f32.mrf.mxu0
        %v2512 = vadd.f32 %v2423, %v2511
        %v2513 = vpop.f32.mrf.mxu0
        %v2514 = vadd.f32 %v2425, %v2513
        %2515 = vmatmul.bf16.gmra.mxu0 %v1078
        %v2516 = vpop.f32.mrf.mxu0
        %v2517 = vadd.f32 %v2428, %v2516
        %v2518 = vpop.f32.mrf.mxu0
        %v2519 = vadd.f32 %v2430, %v2518
        %2520 = vmatmul.bf16.gmra.mxu0 %v1079
        %v2521 = vpop.f32.mrf.mxu0
        %v2522 = vadd.f32 %v2433, %v2521
        %v2523 = vpop.f32.mrf.mxu0
        %v2524 = vadd.f32 %v2435, %v2523
        %2525 = vdwg.mxu0
        %2526 = vmatpush.bf16.msra.mxu0 %v2227
        %2527 = vmatpush.bf16.msra.mxu0 %v2226
        %2528 = vmatpush.bf16.msra.mxu0 %v2225
        %2529 = vmatpush.bf16.msra.mxu0 %v2224
        %2530 = vmatpush.bf16.msra.mxu0 %v2223
        %2531 = vmatpush.bf16.msra.mxu0 %v2222
        %2532 = vmatpush.bf16.msra.mxu0 %v2221
        %2533 = vmatpush.bf16.msra.mxu0 %v2220
        %2534 = vmatmul.bf16.gmra.mxu0 %v1160
        %v2535 = vpop.f32.mrf.mxu0
        %v2536 = vadd.f32 %v2447, %v2535
        %v2537 = vpop.f32.mrf.mxu0
        %v2538 = vadd.f32 %v2449, %v2537
        %2539 = vmatmul.bf16.gmra.mxu0 %v1161
        %v2540 = vpop.f32.mrf.mxu0
        %v2541 = vadd.f32 %v2452, %v2540
        %v2542 = vpop.f32.mrf.mxu0
        %v2543 = vadd.f32 %v2454, %v2542
        %2544 = vmatmul.bf16.gmra.mxu0 %v1162
        %v2545 = vpop.f32.mrf.mxu0
        %v2546 = vadd.f32 %v2457, %v2545
        %v2547 = vpop.f32.mrf.mxu0
        %v2548 = vadd.f32 %v2459, %v2547
        %2549 = vmatmul.bf16.gmra.mxu0 %v1163
        %v2550 = vpop.f32.mrf.mxu0
        %v2551 = vadd.f32 %v2462, %v2550
        %v2552 = vpop.f32.mrf.mxu0
        %v2553 = vadd.f32 %v2464, %v2552
        %2554 = vmatmul.bf16.gmra.mxu0 %v1164
        %v2555 = vpop.f32.mrf.mxu0
        %v2556 = vadd.f32 %v2467, %v2555
        %v2557 = vpop.f32.mrf.mxu0
        %v2558 = vadd.f32 %v2469, %v2557
        %2559 = vmatmul.bf16.gmra.mxu0 %v1165
        %v2560 = vpop.f32.mrf.mxu0
        %v2561 = vadd.f32 %v2472, %v2560
        %v2562 = vpop.f32.mrf.mxu0
        %v2563 = vadd.f32 %v2474, %v2562
        %2564 = vmatmul.bf16.gmra.mxu0 %v1166
        %v2565 = vpop.f32.mrf.mxu0
        %v2566 = vadd.f32 %v2477, %v2565
        %v2567 = vpop.f32.mrf.mxu0
        %v2568 = vadd.f32 %v2479, %v2567
        %2569 = vmatmul.bf16.gmra.mxu0 %v1167
        %v2570 = vpop.f32.mrf.mxu0
        %v2571 = vadd.f32 %v2482, %v2570
        %v2572 = vpop.f32.mrf.mxu0
        %v2573 = vadd.f32 %v2484, %v2572
        %2574 = vmatmul.bf16.gmra.mxu0 %v1168
        %v2575 = vpop.f32.mrf.mxu0
        %v2576 = vadd.f32 %v2487, %v2575
        %v2577 = vpop.f32.mrf.mxu0
        %v2578 = vadd.f32 %v2489, %v2577
        %2579 = vmatmul.bf16.gmra.mxu0 %v1169
        %v2580 = vpop.f32.mrf.mxu0
        %v2581 = vadd.f32 %v2492, %v2580
        %v2582 = vpop.f32.mrf.mxu0
        %v2583 = vadd.f32 %v2494, %v2582
        %2584 = vmatmul.bf16.gmra.mxu0 %v1170
        %v2585 = vpop.f32.mrf.mxu0
        %v2586 = vadd.f32 %v2497, %v2585
        %v2587 = vpop.f32.mrf.mxu0
        %v2588 = vadd.f32 %v2499, %v2587
        %2589 = vmatmul.bf16.gmra.mxu0 %v1171
        %v2590 = vpop.f32.mrf.mxu0
        %v2591 = vadd.f32 %v2502, %v2590
        %v2592 = vpop.f32.mrf.mxu0
        %v2593 = vadd.f32 %v2504, %v2592
        %2594 = vmatmul.bf16.gmra.mxu0 %v1172
        %v2595 = vpop.f32.mrf.mxu0
        %v2596 = vadd.f32 %v2507, %v2595
        %v2597 = vpop.f32.mrf.mxu0
        %v2598 = vadd.f32 %v2509, %v2597
        %2599 = vmatmul.bf16.gmra.mxu0 %v1173
        %v2600 = vpop.f32.mrf.mxu0
        %v2601 = vadd.f32 %v2512, %v2600
        %v2602 = vpop.f32.mrf.mxu0
        %v2603 = vadd.f32 %v2514, %v2602
        %2604 = vmatmul.bf16.gmra.mxu0 %v1174
        %v2605 = vpop.f32.mrf.mxu0
        %v2606 = vadd.f32 %v2517, %v2605
        %v2607 = vpop.f32.mrf.mxu0
        %v2608 = vadd.f32 %v2519, %v2607
        %2609 = vmatmul.bf16.gmra.mxu0 %v1175
        %v2610 = vpop.f32.mrf.mxu0
        %v2611 = vadd.f32 %v2522, %v2610
        %v2612 = vpop.f32.mrf.mxu0
        %v2613 = vadd.f32 %v2524, %v2612
        %2614 = vdwg.mxu0
        %2615 = vmatpush.bf16.msra.mxu0 %v2235
        %2616 = vmatpush.bf16.msra.mxu0 %v2234
        %2617 = vmatpush.bf16.msra.mxu0 %v2233
        %2618 = vmatpush.bf16.msra.mxu0 %v2232
        %2619 = vmatpush.bf16.msra.mxu0 %v2231
        %2620 = vmatpush.bf16.msra.mxu0 %v2230
        %2621 = vmatpush.bf16.msra.mxu0 %v2229
        %2622 = vmatpush.bf16.msra.mxu0 %v2228
        %2623 = vmatmul.bf16.gmra.mxu0 %v1256
        %v2624 = vpop.f32.mrf.mxu0
        %v2625 = vadd.f32 %v2536, %v2624
        %v2626 = vpop.f32.mrf.mxu0
        %v2627 = vadd.f32 %v2538, %v2626
        %2628 = vmatmul.bf16.gmra.mxu0 %v1257
        %v2629 = vpop.f32.mrf.mxu0
        %v2630 = vadd.f32 %v2541, %v2629
        %v2631 = vpop.f32.mrf.mxu0
        %v2632 = vadd.f32 %v2543, %v2631
        %2633 = vmatmul.bf16.gmra.mxu0 %v1258
        %v2634 = vpop.f32.mrf.mxu0
        %v2635 = vadd.f32 %v2546, %v2634
        %v2636 = vpop.f32.mrf.mxu0
        %v2637 = vadd.f32 %v2548, %v2636
        %2638 = vmatmul.bf16.gmra.mxu0 %v1259
        %v2639 = vpop.f32.mrf.mxu0
        %v2640 = vadd.f32 %v2551, %v2639
        %v2641 = vpop.f32.mrf.mxu0
        %v2642 = vadd.f32 %v2553, %v2641
        %2643 = vmatmul.bf16.gmra.mxu0 %v1260
        %v2644 = vpop.f32.mrf.mxu0
        %v2645 = vadd.f32 %v2556, %v2644
        %v2646 = vpop.f32.mrf.mxu0
        %v2647 = vadd.f32 %v2558, %v2646
        %2648 = vmatmul.bf16.gmra.mxu0 %v1261
        %v2649 = vpop.f32.mrf.mxu0
        %v2650 = vadd.f32 %v2561, %v2649
        %v2651 = vpop.f32.mrf.mxu0
        %v2652 = vadd.f32 %v2563, %v2651
        %2653 = vmatmul.bf16.gmra.mxu0 %v1262
        %v2654 = vpop.f32.mrf.mxu0
        %v2655 = vadd.f32 %v2566, %v2654
        %v2656 = vpop.f32.mrf.mxu0
        %v2657 = vadd.f32 %v2568, %v2656
        %2658 = vmatmul.bf16.gmra.mxu0 %v1263
        %v2659 = vpop.f32.mrf.mxu0
        %v2660 = vadd.f32 %v2571, %v2659
        %v2661 = vpop.f32.mrf.mxu0
        %v2662 = vadd.f32 %v2573, %v2661
        %2663 = vmatmul.bf16.gmra.mxu0 %v1264
        %v2664 = vpop.f32.mrf.mxu0
        %v2665 = vadd.f32 %v2576, %v2664
        %v2666 = vpop.f32.mrf.mxu0
        %v2667 = vadd.f32 %v2578, %v2666
        %2668 = vmatmul.bf16.gmra.mxu0 %v1265
        %v2669 = vpop.f32.mrf.mxu0
        %v2670 = vadd.f32 %v2581, %v2669
        %v2671 = vpop.f32.mrf.mxu0
        %v2672 = vadd.f32 %v2583, %v2671
        %2673 = vmatmul.bf16.gmra.mxu0 %v1266
        %v2674 = vpop.f32.mrf.mxu0
        %v2675 = vadd.f32 %v2586, %v2674
        %v2676 = vpop.f32.mrf.mxu0
        %v2677 = vadd.f32 %v2588, %v2676
        %2678 = vmatmul.bf16.gmra.mxu0 %v1267
        %v2679 = vpop.f32.mrf.mxu0
        %v2680 = vadd.f32 %v2591, %v2679
        %v2681 = vpop.f32.mrf.mxu0
        %v2682 = vadd.f32 %v2593, %v2681
        %2683 = vmatmul.bf16.gmra.mxu0 %v1268
        %v2684 = vpop.f32.mrf.mxu0
        %v2685 = vadd.f32 %v2596, %v2684
        %v2686 = vpop.f32.mrf.mxu0
        %v2687 = vadd.f32 %v2598, %v2686
        %2688 = vmatmul.bf16.gmra.mxu0 %v1269
        %v2689 = vpop.f32.mrf.mxu0
        %v2690 = vadd.f32 %v2601, %v2689
        %v2691 = vpop.f32.mrf.mxu0
        %v2692 = vadd.f32 %v2603, %v2691
        %2693 = vmatmul.bf16.gmra.mxu0 %v1270
        %v2694 = vpop.f32.mrf.mxu0
        %v2695 = vadd.f32 %v2606, %v2694
        %v2696 = vpop.f32.mrf.mxu0
        %v2697 = vadd.f32 %v2608, %v2696
        %2698 = vmatmul.bf16.gmra.mxu0 %v1271
        %v2699 = vpop.f32.mrf.mxu0
        %v2700 = vadd.f32 %v2611, %v2699
        %v2701 = vpop.f32.mrf.mxu0
        %v2702 = vadd.f32 %v2613, %v2701
        %2703 = vdwg.mxu0
        %2704 = vmatpush.bf16.msra.mxu0 %v2243
        %2705 = vmatpush.bf16.msra.mxu0 %v2242
        %2706 = vmatpush.bf16.msra.mxu0 %v2241
        %2707 = vmatpush.bf16.msra.mxu0 %v2240
        %2708 = vmatpush.bf16.msra.mxu0 %v2239
        %2709 = vmatpush.bf16.msra.mxu0 %v2238
        %2710 = vmatpush.bf16.msra.mxu0 %v2237
        %2711 = vmatpush.bf16.msra.mxu0 %v2236
        %2712 = vmatmul.bf16.gmra.mxu0 %v1352
        %v2713 = vpop.f32.mrf.mxu0
        %v2714 = vadd.f32 %v2625, %v2713
        %v2715 = vpop.f32.mrf.mxu0
        %v2716 = vadd.f32 %v2627, %v2715
        %2717 = vmatmul.bf16.gmra.mxu0 %v1353
        %v2718 = vpop.f32.mrf.mxu0
        %v2719 = vadd.f32 %v2630, %v2718
        %v2720 = vpop.f32.mrf.mxu0
        %v2721 = vadd.f32 %v2632, %v2720
        %2722 = vmatmul.bf16.gmra.mxu0 %v1354
        %v2723 = vpop.f32.mrf.mxu0
        %v2724 = vadd.f32 %v2635, %v2723
        %v2725 = vpop.f32.mrf.mxu0
        %v2726 = vadd.f32 %v2637, %v2725
        %2727 = vmatmul.bf16.gmra.mxu0 %v1355
        %v2728 = vpop.f32.mrf.mxu0
        %v2729 = vadd.f32 %v2640, %v2728
        %v2730 = vpop.f32.mrf.mxu0
        %v2731 = vadd.f32 %v2642, %v2730
        %2732 = vmatmul.bf16.gmra.mxu0 %v1356
        %v2733 = vpop.f32.mrf.mxu0
        %v2734 = vadd.f32 %v2645, %v2733
        %v2735 = vpop.f32.mrf.mxu0
        %v2736 = vadd.f32 %v2647, %v2735
        %2737 = vmatmul.bf16.gmra.mxu0 %v1357
        %v2738 = vpop.f32.mrf.mxu0
        %v2739 = vadd.f32 %v2650, %v2738
        %v2740 = vpop.f32.mrf.mxu0
        %v2741 = vadd.f32 %v2652, %v2740
        %2742 = vmatmul.bf16.gmra.mxu0 %v1358
        %v2743 = vpop.f32.mrf.mxu0
        %v2744 = vadd.f32 %v2655, %v2743
        %v2745 = vpop.f32.mrf.mxu0
        %v2746 = vadd.f32 %v2657, %v2745
        %2747 = vmatmul.bf16.gmra.mxu0 %v1359
        %v2748 = vpop.f32.mrf.mxu0
        %v2749 = vadd.f32 %v2660, %v2748
        %v2750 = vpop.f32.mrf.mxu0
        %v2751 = vadd.f32 %v2662, %v2750
        %2752 = vmatmul.bf16.gmra.mxu0 %v1360
        %v2753 = vpop.f32.mrf.mxu0
        %v2754 = vadd.f32 %v2665, %v2753
        %v2755 = vpop.f32.mrf.mxu0
        %v2756 = vadd.f32 %v2667, %v2755
        %2757 = vmatmul.bf16.gmra.mxu0 %v1361
        %v2758 = vpop.f32.mrf.mxu0
        %v2759 = vadd.f32 %v2670, %v2758
        %v2760 = vpop.f32.mrf.mxu0
        %v2761 = vadd.f32 %v2672, %v2760
        %2762 = vmatmul.bf16.gmra.mxu0 %v1362
        %v2763 = vpop.f32.mrf.mxu0
        %v2764 = vadd.f32 %v2675, %v2763
        %v2765 = vpop.f32.mrf.mxu0
        %v2766 = vadd.f32 %v2677, %v2765
        %2767 = vmatmul.bf16.gmra.mxu0 %v1363
        %v2768 = vpop.f32.mrf.mxu0
        %v2769 = vadd.f32 %v2680, %v2768
        %v2770 = vpop.f32.mrf.mxu0
        %v2771 = vadd.f32 %v2682, %v2770
        %2772 = vmatmul.bf16.gmra.mxu0 %v1364
        %v2773 = vpop.f32.mrf.mxu0
        %v2774 = vadd.f32 %v2685, %v2773
        %v2775 = vpop.f32.mrf.mxu0
        %v2776 = vadd.f32 %v2687, %v2775
        %2777 = vmatmul.bf16.gmra.mxu0 %v1365
        %v2778 = vpop.f32.mrf.mxu0
        %v2779 = vadd.f32 %v2690, %v2778
        %v2780 = vpop.f32.mrf.mxu0
        %v2781 = vadd.f32 %v2692, %v2780
        %2782 = vmatmul.bf16.gmra.mxu0 %v1366
        %v2783 = vpop.f32.mrf.mxu0
        %v2784 = vadd.f32 %v2695, %v2783
        %v2785 = vpop.f32.mrf.mxu0
        %v2786 = vadd.f32 %v2697, %v2785
        %2787 = vmatmul.bf16.gmra.mxu0 %v1367
        %v2788 = vpop.f32.mrf.mxu0
        %v2789 = vadd.f32 %v2700, %v2788
        %v2790 = vpop.f32.mrf.mxu0
        %v2791 = vadd.f32 %v2702, %v2790
        %2792 = vdwg.mxu0
        %2793 = vmatpush.bf16.msra.mxu0 %v2251
        %2794 = vmatpush.bf16.msra.mxu0 %v2250
        %2795 = vmatpush.bf16.msra.mxu0 %v2249
        %2796 = vmatpush.bf16.msra.mxu0 %v2248
        %2797 = vmatpush.bf16.msra.mxu0 %v2247
        %2798 = vmatpush.bf16.msra.mxu0 %v2246
        %2799 = vmatpush.bf16.msra.mxu0 %v2245
        %2800 = vmatpush.bf16.msra.mxu0 %v2244
        %2801 = vmatmul.bf16.gmra.mxu0 %v1448
        %v2802 = vpop.f32.mrf.mxu0
        %v2803 = vadd.f32 %v2714, %v2802
        %v2804 = vpop.f32.mrf.mxu0
        %v2805 = vadd.f32 %v2716, %v2804
        %2806 = vmatmul.bf16.gmra.mxu0 %v1449
        %v2807 = vpop.f32.mrf.mxu0
        %v2808 = vadd.f32 %v2719, %v2807
        %v2809 = vpop.f32.mrf.mxu0
        %v2810 = vadd.f32 %v2721, %v2809
        %2811 = vmatmul.bf16.gmra.mxu0 %v1450
        %v2812 = vpop.f32.mrf.mxu0
        %v2813 = vadd.f32 %v2724, %v2812
        %v2814 = vpop.f32.mrf.mxu0
        %v2815 = vadd.f32 %v2726, %v2814
        %2816 = vmatmul.bf16.gmra.mxu0 %v1451
        %v2817 = vpop.f32.mrf.mxu0
        %v2818 = vadd.f32 %v2729, %v2817
        %v2819 = vpop.f32.mrf.mxu0
        %v2820 = vadd.f32 %v2731, %v2819
        %2821 = vmatmul.bf16.gmra.mxu0 %v1452
        %v2822 = vpop.f32.mrf.mxu0
        %v2823 = vadd.f32 %v2734, %v2822
        %v2824 = vpop.f32.mrf.mxu0
        %v2825 = vadd.f32 %v2736, %v2824
        %2826 = vmatmul.bf16.gmra.mxu0 %v1453
        %v2827 = vpop.f32.mrf.mxu0
        %v2828 = vadd.f32 %v2739, %v2827
        %v2829 = vpop.f32.mrf.mxu0
        %v2830 = vadd.f32 %v2741, %v2829
        %2831 = vmatmul.bf16.gmra.mxu0 %v1454
        %v2832 = vpop.f32.mrf.mxu0
        %v2833 = vadd.f32 %v2744, %v2832
        %v2834 = vpop.f32.mrf.mxu0
        %v2835 = vadd.f32 %v2746, %v2834
        %2836 = vmatmul.bf16.gmra.mxu0 %v1455
        %v2837 = vpop.f32.mrf.mxu0
        %v2838 = vadd.f32 %v2749, %v2837
        %v2839 = vpop.f32.mrf.mxu0
        %v2840 = vadd.f32 %v2751, %v2839
        %2841 = vmatmul.bf16.gmra.mxu0 %v1456
        %v2842 = vpop.f32.mrf.mxu0
        %v2843 = vadd.f32 %v2754, %v2842
        %v2844 = vpop.f32.mrf.mxu0
        %v2845 = vadd.f32 %v2756, %v2844
        %2846 = vmatmul.bf16.gmra.mxu0 %v1457
        %v2847 = vpop.f32.mrf.mxu0
        %v2848 = vadd.f32 %v2759, %v2847
        %v2849 = vpop.f32.mrf.mxu0
        %v2850 = vadd.f32 %v2761, %v2849
        %2851 = vmatmul.bf16.gmra.mxu0 %v1458
        %v2852 = vpop.f32.mrf.mxu0
        %v2853 = vadd.f32 %v2764, %v2852
        %v2854 = vpop.f32.mrf.mxu0
        %v2855 = vadd.f32 %v2766, %v2854
        %2856 = vmatmul.bf16.gmra.mxu0 %v1459
        %v2857 = vpop.f32.mrf.mxu0
        %v2858 = vadd.f32 %v2769, %v2857
        %v2859 = vpop.f32.mrf.mxu0
        %v2860 = vadd.f32 %v2771, %v2859
        %2861 = vmatmul.bf16.gmra.mxu0 %v1460
        %v2862 = vpop.f32.mrf.mxu0
        %v2863 = vadd.f32 %v2774, %v2862
        %v2864 = vpop.f32.mrf.mxu0
        %v2865 = vadd.f32 %v2776, %v2864
        %2866 = vmatmul.bf16.gmra.mxu0 %v1461
        %v2867 = vpop.f32.mrf.mxu0
        %v2868 = vadd.f32 %v2779, %v2867
        %v2869 = vpop.f32.mrf.mxu0
        %v2870 = vadd.f32 %v2781, %v2869
        %2871 = vmatmul.bf16.gmra.mxu0 %v1462
        %v2872 = vpop.f32.mrf.mxu0
        %v2873 = vadd.f32 %v2784, %v2872
        %v2874 = vpop.f32.mrf.mxu0
        %v2875 = vadd.f32 %v2786, %v2874
        %2876 = vmatmul.bf16.gmra.mxu0 %v1463
        %v2877 = vpop.f32.mrf.mxu0
        %v2878 = vadd.f32 %v2789, %v2877
        %v2879 = vpop.f32.mrf.mxu0
        %v2880 = vadd.f32 %v2791, %v2879
        %2881 = vdwg.mxu0
        %2882 = vmatpush.bf16.msra.mxu0 %v2259
        %2883 = vmatpush.bf16.msra.mxu0 %v2258
        %2884 = vmatpush.bf16.msra.mxu0 %v2257
        %2885 = vmatpush.bf16.msra.mxu0 %v2256
        %2886 = vmatpush.bf16.msra.mxu0 %v2255
        %2887 = vmatpush.bf16.msra.mxu0 %v2254
        %2888 = vmatpush.bf16.msra.mxu0 %v2253
        %2889 = vmatpush.bf16.msra.mxu0 %v2252
        %2890 = vmatmul.bf16.gmra.mxu0 %v1544
        %v2891 = vpop.f32.mrf.mxu0
        %v2892 = vadd.f32 %v2803, %v2891
        %v2893 = vpop.f32.mrf.mxu0
        %v2894 = vadd.f32 %v2805, %v2893
        %2895 = vmatmul.bf16.gmra.mxu0 %v1545
        %v2896 = vpop.f32.mrf.mxu0
        %v2897 = vadd.f32 %v2808, %v2896
        %v2898 = vpop.f32.mrf.mxu0
        %v2899 = vadd.f32 %v2810, %v2898
        %2900 = vmatmul.bf16.gmra.mxu0 %v1546
        %v2901 = vpop.f32.mrf.mxu0
        %v2902 = vadd.f32 %v2813, %v2901
        %v2903 = vpop.f32.mrf.mxu0
        %v2904 = vadd.f32 %v2815, %v2903
        %2905 = vmatmul.bf16.gmra.mxu0 %v1547
        %v2906 = vpop.f32.mrf.mxu0
        %v2907 = vadd.f32 %v2818, %v2906
        %v2908 = vpop.f32.mrf.mxu0
        %v2909 = vadd.f32 %v2820, %v2908
        %2910 = vmatmul.bf16.gmra.mxu0 %v1548
        %v2911 = vpop.f32.mrf.mxu0
        %v2912 = vadd.f32 %v2823, %v2911
        %v2913 = vpop.f32.mrf.mxu0
        %v2914 = vadd.f32 %v2825, %v2913
        %2915 = vmatmul.bf16.gmra.mxu0 %v1549
        %v2916 = vpop.f32.mrf.mxu0
        %v2917 = vadd.f32 %v2828, %v2916
        %v2918 = vpop.f32.mrf.mxu0
        %v2919 = vadd.f32 %v2830, %v2918
        %2920 = vmatmul.bf16.gmra.mxu0 %v1550
        %v2921 = vpop.f32.mrf.mxu0
        %v2922 = vadd.f32 %v2833, %v2921
        %v2923 = vpop.f32.mrf.mxu0
        %v2924 = vadd.f32 %v2835, %v2923
        %2925 = vmatmul.bf16.gmra.mxu0 %v1551
        %v2926 = vpop.f32.mrf.mxu0
        %v2927 = vadd.f32 %v2838, %v2926
        %v2928 = vpop.f32.mrf.mxu0
        %v2929 = vadd.f32 %v2840, %v2928
        %2930 = vmatmul.bf16.gmra.mxu0 %v1552
        %v2931 = vpop.f32.mrf.mxu0
        %v2932 = vadd.f32 %v2843, %v2931
        %v2933 = vpop.f32.mrf.mxu0
        %v2934 = vadd.f32 %v2845, %v2933
        %2935 = vmatmul.bf16.gmra.mxu0 %v1553
        %v2936 = vpop.f32.mrf.mxu0
        %v2937 = vadd.f32 %v2848, %v2936
        %v2938 = vpop.f32.mrf.mxu0
        %v2939 = vadd.f32 %v2850, %v2938
        %2940 = vmatmul.bf16.gmra.mxu0 %v1554
        %v2941 = vpop.f32.mrf.mxu0
        %v2942 = vadd.f32 %v2853, %v2941
        %v2943 = vpop.f32.mrf.mxu0
        %v2944 = vadd.f32 %v2855, %v2943
        %2945 = vmatmul.bf16.gmra.mxu0 %v1555
        %v2946 = vpop.f32.mrf.mxu0
        %v2947 = vadd.f32 %v2858, %v2946
        %v2948 = vpop.f32.mrf.mxu0
        %v2949 = vadd.f32 %v2860, %v2948
        %2950 = vmatmul.bf16.gmra.mxu0 %v1556
        %v2951 = vpop.f32.mrf.mxu0
        %v2952 = vadd.f32 %v2863, %v2951
        %v2953 = vpop.f32.mrf.mxu0
        %v2954 = vadd.f32 %v2865, %v2953
        %2955 = vmatmul.bf16.gmra.mxu0 %v1557
        %v2956 = vpop.f32.mrf.mxu0
        %v2957 = vadd.f32 %v2868, %v2956
        %v2958 = vpop.f32.mrf.mxu0
        %v2959 = vadd.f32 %v2870, %v2958
        %2960 = vmatmul.bf16.gmra.mxu0 %v1558
        %v2961 = vpop.f32.mrf.mxu0
        %v2962 = vadd.f32 %v2873, %v2961
        %v2963 = vpop.f32.mrf.mxu0
        %v2964 = vadd.f32 %v2875, %v2963
        %2965 = vmatmul.bf16.gmra.mxu0 %v1559
        %v2966 = vpop.f32.mrf.mxu0
        %v2967 = vadd.f32 %v2878, %v2966
        %v2968 = vpop.f32.mrf.mxu0
        %v2969 = vadd.f32 %v2880, %v2968
        %2970 = vdwg.mxu0
        %2971 = vmatpush.bf16.msra.mxu0 %v2267
        %2972 = vmatpush.bf16.msra.mxu0 %v2266
        %2973 = vmatpush.bf16.msra.mxu0 %v2265
        %2974 = vmatpush.bf16.msra.mxu0 %v2264
        %2975 = vmatpush.bf16.msra.mxu0 %v2263
        %2976 = vmatpush.bf16.msra.mxu0 %v2262
        %2977 = vmatpush.bf16.msra.mxu0 %v2261
        %2978 = vmatpush.bf16.msra.mxu0 %v2260
        %2979 = vmatmul.bf16.gmra.mxu0 %v1640
        %v2980 = vpop.f32.mrf.mxu0
        %v2981 = vadd.f32 %v2892, %v2980
        %v2982 = vpop.f32.mrf.mxu0
        %v2983 = vadd.f32 %v2894, %v2982
        %2984 = vmatmul.bf16.gmra.mxu0 %v1641
        %v2985 = vpop.f32.mrf.mxu0
        %v2986 = vadd.f32 %v2897, %v2985
        %v2987 = vpop.f32.mrf.mxu0
        %v2988 = vadd.f32 %v2899, %v2987
        %2989 = vmatmul.bf16.gmra.mxu0 %v1642
        %v2990 = vpop.f32.mrf.mxu0
        %v2991 = vadd.f32 %v2902, %v2990
        %v2992 = vpop.f32.mrf.mxu0
        %v2993 = vadd.f32 %v2904, %v2992
        %2994 = vmatmul.bf16.gmra.mxu0 %v1643
        %v2995 = vpop.f32.mrf.mxu0
        %v2996 = vadd.f32 %v2907, %v2995
        %v2997 = vpop.f32.mrf.mxu0
        %v2998 = vadd.f32 %v2909, %v2997
        %2999 = vmatmul.bf16.gmra.mxu0 %v1644
        %v3000 = vpop.f32.mrf.mxu0
        %v3001 = vadd.f32 %v2912, %v3000
        %v3002 = vpop.f32.mrf.mxu0
        %v3003 = vadd.f32 %v2914, %v3002
        %3004 = vmatmul.bf16.gmra.mxu0 %v1645
        %v3005 = vpop.f32.mrf.mxu0
        %v3006 = vadd.f32 %v2917, %v3005
        %v3007 = vpop.f32.mrf.mxu0
        %v3008 = vadd.f32 %v2919, %v3007
        %3009 = vmatmul.bf16.gmra.mxu0 %v1646
        %v3010 = vpop.f32.mrf.mxu0
        %v3011 = vadd.f32 %v2922, %v3010
        %v3012 = vpop.f32.mrf.mxu0
        %v3013 = vadd.f32 %v2924, %v3012
        %3014 = vmatmul.bf16.gmra.mxu0 %v1647
        %v3015 = vpop.f32.mrf.mxu0
        %v3016 = vadd.f32 %v2927, %v3015
        %v3017 = vpop.f32.mrf.mxu0
        %v3018 = vadd.f32 %v2929, %v3017
        %3019 = vmatmul.bf16.gmra.mxu0 %v1648
        %v3020 = vpop.f32.mrf.mxu0
        %v3021 = vadd.f32 %v2932, %v3020
        %v3022 = vpop.f32.mrf.mxu0
        %v3023 = vadd.f32 %v2934, %v3022
        %3024 = vmatmul.bf16.gmra.mxu0 %v1649
        %v3025 = vpop.f32.mrf.mxu0
        %v3026 = vadd.f32 %v2937, %v3025
        %v3027 = vpop.f32.mrf.mxu0
        %v3028 = vadd.f32 %v2939, %v3027
        %3029 = vmatmul.bf16.gmra.mxu0 %v1650
        %v3030 = vpop.f32.mrf.mxu0
        %v3031 = vadd.f32 %v2942, %v3030
        %v3032 = vpop.f32.mrf.mxu0
        %v3033 = vadd.f32 %v2944, %v3032
        %3034 = vmatmul.bf16.gmra.mxu0 %v1651
        %v3035 = vpop.f32.mrf.mxu0
        %v3036 = vadd.f32 %v2947, %v3035
        %v3037 = vpop.f32.mrf.mxu0
        %v3038 = vadd.f32 %v2949, %v3037
        %3039 = vmatmul.bf16.gmra.mxu0 %v1652
        %v3040 = vpop.f32.mrf.mxu0
        %v3041 = vadd.f32 %v2952, %v3040
        %v3042 = vpop.f32.mrf.mxu0
        %v3043 = vadd.f32 %v2954, %v3042
        %3044 = vmatmul.bf16.gmra.mxu0 %v1653
        %v3045 = vpop.f32.mrf.mxu0
        %v3046 = vadd.f32 %v2957, %v3045
        %v3047 = vpop.f32.mrf.mxu0
        %v3048 = vadd.f32 %v2959, %v3047
        %3049 = vmatmul.bf16.gmra.mxu0 %v1654
        %v3050 = vpop.f32.mrf.mxu0
        %v3051 = vadd.f32 %v2962, %v3050
        %v3052 = vpop.f32.mrf.mxu0
        %v3053 = vadd.f32 %v2964, %v3052
        %3054 = vmatmul.bf16.gmra.mxu0 %v1655
        %v3055 = vpop.f32.mrf.mxu0
        %v3056 = vadd.f32 %v2967, %v3055
        %v3057 = vpop.f32.mrf.mxu0
        %v3058 = vadd.f32 %v2969, %v3057
        %3059 = vdwg.mxu0
        %3060 = vmatpush.bf16.msra.mxu0 %v2275
        %3061 = vmatpush.bf16.msra.mxu0 %v2274
        %3062 = vmatpush.bf16.msra.mxu0 %v2273
        %3063 = vmatpush.bf16.msra.mxu0 %v2272
        %3064 = vmatpush.bf16.msra.mxu0 %v2271
        %3065 = vmatpush.bf16.msra.mxu0 %v2270
        %3066 = vmatpush.bf16.msra.mxu0 %v2269
        %3067 = vmatpush.bf16.msra.mxu0 %v2268
        %3068 = vmatmul.bf16.gmra.mxu0 %v1736
        %v3069 = vpop.f32.mrf.mxu0
        %v3070 = vadd.f32 %v2981, %v3069
        %v3071 = vpop.f32.mrf.mxu0
        %v3072 = vadd.f32 %v2983, %v3071
        %3073 = vmatmul.bf16.gmra.mxu0 %v1737
        %v3074 = vpop.f32.mrf.mxu0
        %v3075 = vadd.f32 %v2986, %v3074
        %v3076 = vpop.f32.mrf.mxu0
        %v3077 = vadd.f32 %v2988, %v3076
        %3078 = vmatmul.bf16.gmra.mxu0 %v1738
        %v3079 = vpop.f32.mrf.mxu0
        %v3080 = vadd.f32 %v2991, %v3079
        %v3081 = vpop.f32.mrf.mxu0
        %v3082 = vadd.f32 %v2993, %v3081
        %3083 = vmatmul.bf16.gmra.mxu0 %v1739
        %v3084 = vpop.f32.mrf.mxu0
        %v3085 = vadd.f32 %v2996, %v3084
        %v3086 = vpop.f32.mrf.mxu0
        %v3087 = vadd.f32 %v2998, %v3086
        %3088 = vmatmul.bf16.gmra.mxu0 %v1740
        %v3089 = vpop.f32.mrf.mxu0
        %v3090 = vadd.f32 %v3001, %v3089
        %v3091 = vpop.f32.mrf.mxu0
        %v3092 = vadd.f32 %v3003, %v3091
        %3093 = vmatmul.bf16.gmra.mxu0 %v1741
        %v3094 = vpop.f32.mrf.mxu0
        %v3095 = vadd.f32 %v3006, %v3094
        %v3096 = vpop.f32.mrf.mxu0
        %v3097 = vadd.f32 %v3008, %v3096
        %3098 = vmatmul.bf16.gmra.mxu0 %v1742
        %v3099 = vpop.f32.mrf.mxu0
        %v3100 = vadd.f32 %v3011, %v3099
        %v3101 = vpop.f32.mrf.mxu0
        %v3102 = vadd.f32 %v3013, %v3101
        %3103 = vmatmul.bf16.gmra.mxu0 %v1743
        %v3104 = vpop.f32.mrf.mxu0
        %v3105 = vadd.f32 %v3016, %v3104
        %v3106 = vpop.f32.mrf.mxu0
        %v3107 = vadd.f32 %v3018, %v3106
        %3108 = vmatmul.bf16.gmra.mxu0 %v1744
        %v3109 = vpop.f32.mrf.mxu0
        %v3110 = vadd.f32 %v3021, %v3109
        %v3111 = vpop.f32.mrf.mxu0
        %v3112 = vadd.f32 %v3023, %v3111
        %3113 = vmatmul.bf16.gmra.mxu0 %v1745
        %v3114 = vpop.f32.mrf.mxu0
        %v3115 = vadd.f32 %v3026, %v3114
        %v3116 = vpop.f32.mrf.mxu0
        %v3117 = vadd.f32 %v3028, %v3116
        %3118 = vmatmul.bf16.gmra.mxu0 %v1746
        %v3119 = vpop.f32.mrf.mxu0
        %v3120 = vadd.f32 %v3031, %v3119
        %v3121 = vpop.f32.mrf.mxu0
        %v3122 = vadd.f32 %v3033, %v3121
        %3123 = vmatmul.bf16.gmra.mxu0 %v1747
        %v3124 = vpop.f32.mrf.mxu0
        %v3125 = vadd.f32 %v3036, %v3124
        %v3126 = vpop.f32.mrf.mxu0
        %v3127 = vadd.f32 %v3038, %v3126
        %3128 = vmatmul.bf16.gmra.mxu0 %v1748
        %v3129 = vpop.f32.mrf.mxu0
        %v3130 = vadd.f32 %v3041, %v3129
        %v3131 = vpop.f32.mrf.mxu0
        %v3132 = vadd.f32 %v3043, %v3131
        %3133 = vmatmul.bf16.gmra.mxu0 %v1749
        %v3134 = vpop.f32.mrf.mxu0
        %v3135 = vadd.f32 %v3046, %v3134
        %v3136 = vpop.f32.mrf.mxu0
        %v3137 = vadd.f32 %v3048, %v3136
        %3138 = vmatmul.bf16.gmra.mxu0 %v1750
        %v3139 = vpop.f32.mrf.mxu0
        %v3140 = vadd.f32 %v3051, %v3139
        %v3141 = vpop.f32.mrf.mxu0
        %v3142 = vadd.f32 %v3053, %v3141
        %3143 = vmatmul.bf16.gmra.mxu0 %v1751
        %v3144 = vpop.f32.mrf.mxu0
        %v3145 = vadd.f32 %v3056, %v3144
        %v3146 = vpop.f32.mrf.mxu0
        %v3147 = vadd.f32 %v3058, %v3146
        %3148 = vdwg.mxu0
        %3149 = vst [vmem:[%s207] sm:$0xff] %v3070
        %3150 = vst [vmem:[%s207 + $0x8] sm:$0xff] %v3072
        %3151 = vst [vmem:[%s207 + $0x10] sm:$0xff] %v3075
        %3152 = vst [vmem:[%s207 + $0x18] sm:$0xff] %v3077
        %3153 = vst [vmem:[%s207 + $0x20] sm:$0xff] %v3080
        %3154 = vst [vmem:[%s207 + $0x28] sm:$0xff] %v3082
        %3155 = vst [vmem:[%s207 + $0x30] sm:$0xff] %v3085
        %3156 = vst [vmem:[%s207 + $0x38] sm:$0xff] %v3087
        %3157 = vst [vmem:[%s207 + $0x40] sm:$0xff] %v3090
        %3158 = vst [vmem:[%s207 + $0x48] sm:$0xff] %v3092
        %3159 = vst [vmem:[%s207 + $0x50] sm:$0xff] %v3095
        %3160 = vst [vmem:[%s207 + $0x58] sm:$0xff] %v3097
        %3161 = vst [vmem:[%s207 + $0x60] sm:$0xff] %v3100
        %3162 = vst [vmem:[%s207 + $0x68] sm:$0xff] %v3102
        %3163 = vst [vmem:[%s207 + $0x70] sm:$0xff] %v3105
        %3164 = vst [vmem:[%s207 + $0x78] sm:$0xff] %v3107
        %3165 = vst [vmem:[%s207 + $0x80] sm:$0xff] %v3110
        %3166 = vst [vmem:[%s207 + $0x88] sm:$0xff] %v3112
        %3167 = vst [vmem:[%s207 + $0x90] sm:$0xff] %v3115
        %3168 = vst [vmem:[%s207 + $0x98] sm:$0xff] %v3117
        %3169 = vst [vmem:[%s207 + $0xa0] sm:$0xff] %v3120
        %3170 = vst [vmem:[%s207 + $0xa8] sm:$0xff] %v3122
        %3171 = vst [vmem:[%s207 + $0xb0] sm:$0xff] %v3125
        %3172 = vst [vmem:[%s207 + $0xb8] sm:$0xff] %v3127
        %3173 = vst [vmem:[%s207 + $0xc0] sm:$0xff] %v3130
        %3174 = vst [vmem:[%s207 + $0xc8] sm:$0xff] %v3132
        %3175 = vst [vmem:[%s207 + $0xd0] sm:$0xff] %v3135
        %3176 = vst [vmem:[%s207 + $0xd8] sm:$0xff] %v3137
        %3177 = vst [vmem:[%s207 + $0xe0] sm:$0xff] %v3140
        %3178 = vst [vmem:[%s207 + $0xe8] sm:$0xff] %v3142
        %3179 = vst [vmem:[%s207 + $0xf0] sm:$0xff] %v3145
        %3180 = vst [vmem:[%s207 + $0xf8] sm:$0xff] %v3147
        %s3181 = sand.u32 %s97, 1
        %s3182 = scalar_lea.sflag [#allocation5], %s3181
        %s3183 = sand.u32 %s97, 1
        %s3184 = smul.addr %s3183, 256
        %s3185 = scalar_lea.vmem [#allocation8], %s3184
        // Predicated region
        $region41: #{tpu_custom_call.1} parent=31 // pred_check
          %p3186 = pneg %p107
        $region42: #{tpu_custom_call.1} parent=31 // pred_check_branch
          %3188 = sbr.rel (%p3186) target = $region44
        $region43: #{tpu_custom_call.1} parent=31 // pred_region
          %3190 = vsyncadd %s3182, 0
          %s3191 = smul.addr %s21, 32
          %s3192 = smul.addr %s3191, 8
          %s3193 = scalar_lea.hbm %s3, %s3192
          %s3194 = sshll.u32 %s3185, 4
          %s3195 = int_to_ptr.vmem [resolvable:$true] %s3194
          %s3196 = sshll.u32 %s3193, 4
          %s3197 = int_to_ptr.hbm [resolvable:$true] %s3196
          %3202 = dma.vmem_to_hbm [thread:$0]  %s3195, 4096, %s3197, %s3182, 128, 128, 8
        $region44: #{tpu_custom_call.1} parent=31 // pred_fallthru
          _
      $region32: #{tpu_custom_call.1} parent=5 // pred_fallthru
        _
      %p3203 = scmp.le.s32.totalorder 2, %s16
      // Predicated region
      $region45: #{tpu_custom_call.1} parent=5 // pred_check
        %p3204 = pneg %p3203
      $region46: #{tpu_custom_call.1} parent=5 // pred_check_branch
        %3206 = sbr.rel (%p3204) target = $region48
      $region47: #{tpu_custom_call.1} parent=5 // pred_region
        %s3207 = ssub.s32 %s16, 2
        // Predicated region
        $region49: #{tpu_custom_call.1} parent=47 // pred_check
          %p3208 = pneg %p113
        $region50: #{tpu_custom_call.1} parent=47 // pred_check_branch
          %3210 = sbr.rel (%p3208) target = $region52
        $region51: #{tpu_custom_call.1} parent=47 // pred_region
          %s3211 = sand.u32 %s98, 1
          %s3212 = scalar_lea.sflag [#allocation5], %s3211
          %s3213 = sand.u32 %s98, 1
          %s3214 = smul.addr %s3213, 256
          %s3215 = scalar_lea.vmem [#allocation8], %s3214
          %3217 = dma.done %s3212, 4096
        $region52: #{tpu_custom_call.1} parent=47 // pred_fallthru
          _
      $region48: #{tpu_custom_call.1} parent=5 // pred_fallthru
        _
    $region6: #{tpu_custom_call.1} parent=1 // loop_footer
      %s20 = sadd.s32 1, %s16
    $region7: #{tpu_custom_call.1} parent=1 // loop_footer_branch
      %15 = sbr.rel target = $region3
    $region8: #{tpu_custom_call.1} parent=1 // loop_exit
      _
    %3218 = vsyncpa [#allocation4], 1
    %s3219 = scalar_lea.sflag [#allocation4], 1
    %3220 = vsyncpa %s3219, 1
    %3221 = vsyncpa [#allocation7], 1
    %3222 = vsyncpa [#allocation5], 1
    %s3223 = scalar_lea.sflag [#allocation5], 1
    %3224 = vsyncpa %s3223, 1

</llo_original>
